<compile_context>
chip_gen: v7x
topology: tpu7x:2x2x1
jax: 0.10.0
libtpu: 0.0.40
codegen_flags: <defaults>
</compile_context>

<pallas_src>
import functools
import math

import jax
import jax.numpy as jnp
from jax.experimental import pallas as pl
from jax.experimental.pallas import tpu as pltpu

_LOG_127_5 = math.log(127.5)
_LOG_1E_M5 = math.log(1e-5)


def _round_up(v, m):
    return -(-v // m) * m


def _cdiv(a, b):
    return -(-a // b)


# ----------------------------------------------------------------------------
# Math helpers (traced inside the kernel)
# ----------------------------------------------------------------------------
def _logistic_logprob(x_c, means, log_scales):
    """Discretized-logistic log-prob. Args broadcast against each other."""
    # Branch masks up front (cheap, short-lived).
    mask_hi = x_c > 0.999
    mask_lo = x_c < -0.999

    centered = x_c - means
    inv_stdv = jnp.exp(-log_scales)
    plus_in = inv_stdv * (centered + 1.0 / 255.0)
    min_in = inv_stdv * (centered - 1.0 / 255.0)
    mid_in = inv_stdv * centered

    sp_plus = jax.nn.softplus(plus_in)
    sp_min = jax.nn.softplus(min_in)
    log_cdf_plus = plus_in - sp_plus           # log(sigmoid(plus_in))
    log_one_minus_cdf_min = -sp_min            # log(1 - sigmoid(min_in))
    log_cdf_min = min_in - sp_min              # log(sigmoid(min_in))

    # log(cdf_plus - cdf_min) fully in log space: no cdf temporaries, one exp
    # and one log instead of two exps + one log + one max.
    # d <= 0 by construction; the min() guards fp rounding, and max(.,1e-12)
    # keeps the dead branch finite when cdf_delta underflows.
    d = jnp.minimum(log_cdf_min - log_cdf_plus, 0.0)
    log_cdf_delta = log_cdf_plus + jnp.log(jnp.maximum(1.0 - jnp.exp(d), 1e-12))

    log_pdf_mid = mid_in - log_scales - 2.0 * jax.nn.softplus(mid_in)

    inner_inner = jnp.where(log_cdf_delta > _LOG_1E_M5,
                            log_cdf_delta,
                            log_pdf_mid - _LOG_127_5)
    inner = jnp.where(mask_hi, log_one_minus_cdf_min, inner_inner)
    return jnp.where(mask_lo, log_cdf_plus, inner)


def _finalize(o_ref, lp_sum, logit_probs, eup_bf16):
    """log_softmax over mixtures (sublane axis), then logsumexp -> (1, tn)."""
    lmax = jnp.max(logit_probs, axis=0, keepdims=True)
    z = logit_probs - lmax
    if eup_bf16:
        e = jnp.exp(z.astype(jnp.bfloat16))
    else:
        e = jnp.exp(z)
    lse = lmax + jnp.log(jnp.sum(e, axis=0, keepdims=True, dtype=jnp.float32))

    lp = lp_sum + (logit_probs - lse)
    pmax = jnp.max(lp, axis=0, keepdims=True)
    z2 = lp - pmax
    if eup_bf16:
        e2 = jnp.exp(z2.astype(jnp.bfloat16))
    else:
        e2 = jnp.exp(z2)
    o_ref[...] = pmax + jnp.log(
        jnp.sum(e2, axis=0, keepdims=True, dtype=jnp.float32))


# ----------------------------------------------------------------------------
# Kernel (channel-vectorized: EUP math on dense (3*nr_mix, tn) slabs)
# ----------------------------------------------------------------------------
def _mixlog_kernel(x_ref, l_ref, o_ref, *, nr_mix, eup_bf16):
    nm = nr_mix
    tn = x_ref.shape[-1]
    x = x_ref[...].astype(jnp.float32) * 2.0 - 1.0        # (3, tn), rescale fused
    logit_probs = l_ref[0:nm, :].astype(jnp.float32)      # (nm, tn)

    def grp(c, k):  # raw-dtype slice; k: 0 -> means, 1 -> log_scales, 2 -> coeffs
        base = nm + (3 * c + k) * nm
        return l_ref[base:base + nm, :]

    # Dense (3*nm, tn) slabs, cast once per slab (bf16 xp stays bf16 until here).
    log_scales = jnp.maximum(
        jnp.concatenate([grp(c, 1) for c in range(3)], axis=0)
        .astype(jnp.float32), -7.0)
    coeff_raw = jnp.concatenate([grp(c, 2) for c in range(3)], axis=0)
    if eup_bf16:
        coeffs = jnp.tanh(coeff_raw.astype(jnp.bfloat16)).astype(jnp.float32)
    else:
        coeffs = jnp.tanh(coeff_raw.astype(jnp.float32))

    # Autoregressive mean adjustment (small VPU work on (nm, tn) pieces).
    x0 = x[0:1, :]
    x1 = x[1:2, :]
    m0 = grp(0, 0).astype(jnp.float32)
    m1 = grp(1, 0).astype(jnp.float32) + coeffs[0:nm, :] * x0
    m2 = (grp(2, 0).astype(jnp.float32)
          + coeffs[nm:2 * nm, :] * x0 + coeffs[2 * nm:, :] * x1)
    means = jnp.concatenate([m0, m1, m2], axis=0)          # (3*nm, tn)

    x_b = jnp.concatenate(
        [jnp.broadcast_to(x[c:c + 1, :], (nm, tn)) for c in range(3)], axis=0)

    logp = _logistic_logprob(x_b, means, log_scales)       # (3*nm, tn)
    lp_sum = logp[0:nm, :] + logp[nm:2 * nm, :] + logp[2 * nm:, :]
    _finalize(o_ref, lp_sum, logit_probs, eup_bf16)


# ----------------------------------------------------------------------------
# Tiling policy (no wrapper-side padding)
# ----------------------------------------------------------------------------
def _choose_tile(HW, B, max_tile):
    """Pick a lane tile with NO wrapper-side jnp.pad.

    * HW <= max_tile: one full-width tile (block == full dim is always legal).
    * Otherwise: largest 128-multiple <= max_tile that divides HW; if none,
      take max_tile and let the Pallas pipeline mask the ragged last tile.
    * If the whole grid would be a single step, split the lane axis so both
      TensorCores get work on v7x (negligible overhead elsewhere).
    """
    if HW <= max_tile:
        tn = HW
    else:
        tn = None
        for k in range(max_tile // 128, 0, -1):
            if HW % (k * 128) == 0:
                tn = k * 128
                break
        if tn is None:
            tn = max_tile  # ragged last tile, masked on store
    n_tiles = _cdiv(HW, tn)
    if B * n_tiles < 2 and HW >= 256:
        tn = _round_up(_cdiv(HW, 2), 128)
        n_tiles = _cdiv(HW, tn)
    return tn, n_tiles


# ----------------------------------------------------------------------------
# Wrapper: DiscretizedMixtureLogisticLikelihood.forward
# ----------------------------------------------------------------------------
def discretized_mixture_logistic_likelihood(x, xp, *, nr_mix, max_tile=4096,
                                            eup_bf16=False):
    """x: (B, 3, H, W) in [0,1] (or (bs,ns,3,h,w)); xp: (B, 10*nr_mix, H, W).

    Returns (B, 1, H, W) per-pixel log-likelihood (B = bs*ns for 5-D input).
    x / xp may be f32 or bf16 (bf16 halves the dominant HBM stream; the kernel
    upcasts per-slab).  eup_bf16=True additionally runs tanh(coeffs) and the
    finalize exps in bf16 (v6e/v7x EUP offload, ~1e-2 accuracy trade).
    """
    if x.ndim == 5:  # (bs, ns, c, h, w) flattening, as in the torch module
        bs, ns, c, h, w = x.shape
        x = x.reshape(bs * ns, c, h, w)
        xp = xp.reshape(bs * ns, -1, h, w)

    B, C, H, W = x.shape
    assert C == 3
    assert xp.shape == (B, 10 * nr_mix, H, W)

    HW = H * W
    tn, n_tiles = _choose_tile(HW, B, max_tile)

    # Free, contiguous reshapes (no NCHW transpose, no padding pass over xp).
    x3 = x.reshape(B, 3, HW)
    l3 = xp.reshape(B, 10 * nr_mix, HW)

    out = pl.pallas_call(
        functools.partial(_mixlog_kernel, nr_mix=nr_mix, eup_bf16=eup_bf16),
        out_shape=jax.ShapeDtypeStruct((B, 1, HW), jnp.float32),
        grid=(B, n_tiles),
        in_specs=[
            pl.BlockSpec((None, 3, tn), lambda b, i: (b, 0, i)),
            # TODO(synk): if a v5e profile shows exposed DMA on this dominant
            # stream, add pipeline_mode=pl.Buffered(3) here.
            pl.BlockSpec((None, 10 * nr_mix, tn), lambda b, i: (b, 0, i)),
        ],
        out_specs=pl.BlockSpec((None, 1, tn), lambda b, i: (b, 0, i)),
        compiler_params=pltpu.CompilerParams(
            dimension_semantics=("parallel", "parallel"),
            vmem_limit_bytes=32 * 1024 * 1024,
        ),
    )(x3, l3)

    return out.reshape(B, 1, H, W)


# ----------------------------------------------------------------------------
# Pure-JAX reference (direct transcription of the torch code) for validation
# ----------------------------------------------------------------------------
def _reference(x, xp, nr_mix):
    x = x.astype(jnp.float32) * 2.0 - 1.0
    xt = jnp.transpose(x, (0, 2, 3, 1))                # (B,H,W,3)
    lt = jnp.transpose(xp.astype(jnp.float32), (0, 2, 3, 1))
    B, H, W, _ = xt.shape
    logit_probs = lt[..., :nr_mix]
    rest = lt[..., nr_mix:].reshape(B, H, W, 3, 3 * nr_mix)
    means = rest[..., :nr_mix]
    log_scales = jnp.maximum(rest[..., nr_mix:2 * nr_mix], -7.0)
    coeffs = jnp.tanh(rest[..., 2 * nr_mix:])
    xb = xt[..., None]                                  # (B,H,W,3,1)
    m2 = means[:, :, :, 1, :] + coeffs[:, :, :, 0, :] * xb[:, :, :, 0, :]
    m3 = (means[:, :, :, 2, :] + coeffs[:, :, :, 1, :] * xb[:, :, :, 0, :]
          + coeffs[:, :, :, 2, :] * xb[:, :, :, 1, :])
    means = jnp.stack([means[:, :, :, 0, :], m2, m3], axis=3)
    xb = jnp.broadcast_to(xb, means.shape)
    centered = xb - means
    inv_stdv = jnp.exp(-log_scales)
    plus_in = inv_stdv * (centered + 1.0 / 255.0)
    cdf_plus = jax.nn.sigmoid(plus_in)
    min_in = inv_stdv * (centered - 1.0 / 255.0)
    cdf_min = jax.nn.sigmoid(min_in)
    log_cdf_plus = plus_in - jax.nn.softplus(plus_in)
    log_one_minus_cdf_min = -jax.nn.softplus(min_in)
    cdf_delta = cdf_plus - cdf_min
    mid_in = inv_stdv * centered
    log_pdf_mid = mid_in - log_scales - 2.0 * jax.nn.softplus(mid_in)
    iic = (cdf_delta > 1e-5).astype(jnp.float32)
    iio = iic * jnp.log(jnp.maximum(cdf_delta, 1e-12)) + (1.0 - iic) * (log_pdf_mid - _LOG_127_5)
    ic = (xb > 0.999).astype(jnp.float32)
    io = ic * log_one_minus_cdf_min + (1.0 - ic) * iio
    cond = (xb < -0.999).astype(jnp.float32)
    log_probs = cond * log_cdf_plus + (1.0 - cond) * io
    log_probs = jnp.sum(log_probs, axis=3) + jax.nn.log_softmax(logit_probs, axis=-1)
    log_probs = jax.scipy.special.logsumexp(log_probs, axis=-1)
    return log_probs[:, None, :, :]


if __name__ == "__main__":
    nr_mix = 10  # xp has 10*nr_mix = 100 channels
    key = jax.random.PRNGKey(0)

    # Shapes exercise: multi-batch single-tile, lane split + ragged last tile,
    # non-128-multiple HW with full-dim tile, and a divisor-tiled larger image.
    shapes = [(2, 16, 16),   # HW=256, 2 grid steps via batch
              (1, 24, 48),   # HW=1152, B=1 -> lane split, ragged last tile
              (1, 20, 20),   # HW=400 (not a 128-multiple), lane split, ragged
              (2, 40, 40)]   # HW=1600, full-dim (non-128-multiple) tile

    first_inputs = None
    for (B, H, W) in shapes:
        key, kx, kl = jax.random.split(key, 3)
        x = jax.random.uniform(kx, (B, 3, H, W), dtype=jnp.float32)      # image in [0,1]
        xp = jax.random.normal(kl, (B, 10 * nr_mix, H, W), dtype=jnp.float32)
        if first_inputs is None:
            first_inputs = (x, xp)

        out = jax.block_until_ready(
            discretized_mixture_logistic_likelihood(x, xp, nr_mix=nr_mix))
        ref = _reference(x, xp, nr_mix)
        assert out.shape == (B, 1, H, W), out.shape
        # Tolerance note: log(cdf_plus - cdf_min) is ill-conditioned near the
        # 1e-5 branch threshold; the kernel's log-space cdf math can diverge
        # from the sigmoid-difference reference by ~1e-3 there (both are
        # equally valid in f32).
        err = float(jnp.max(jnp.abs(out - ref)))
        assert jnp.allclose(out, ref, rtol=1e-3, atol=2e-3), (B, H, W, err)

    # bf16 parameter / image streaming (halves the dominant HBM stream);
    # the kernel upcasts per-slab, so it matches the reference run on the
    # same bf16-quantized inputs.
    x32, xp32 = first_inputs
    x_bf, xp_bf = x32.astype(jnp.bfloat16), xp32.astype(jnp.bfloat16)
    out_bf = jax.block_until_ready(
        discretized_mixture_logistic_likelihood(x_bf, xp_bf, nr_mix=nr_mix))
    ref_bf = _reference(x_bf, xp_bf, nr_mix)
    assert jnp.allclose(out_bf, ref_bf, rtol=1e-3, atol=2e-3)

    # Opt-in bf16 EUP offload (v6e/v7x): coarser accuracy by design, so only
    # sanity-check that it lowers, stays finite, and tracks the f32 reference.
    out_eup = jax.block_until_ready(
        discretized_mixture_logistic_likelihood(x32, xp32, nr_mix=nr_mix,
                                                eup_bf16=True))
    ref32 = _reference(x32, xp32, nr_mix)
    assert bool(jnp.all(jnp.isfinite(out_eup)))
    assert float(jnp.mean(jnp.abs(out_eup - ref32))) < 0.05

    print("KERNEL_OK")
</pallas_src>

<mosaic_0001>
module attributes {stable_mosaic.version = 11 : i64} {
  func.func @_mixlog_kernel(%arg0: i32, %arg1: i32, %arg2: memref<1x3x256xf32, #tpu.memory_space<vmem>>, %arg3: memref<1x100x256xf32, #tpu.memory_space<vmem>>, %arg4: memref<1x1x256xf32, #tpu.memory_space<vmem>>) attributes {dimension_semantics = [#tpu.dimension_semantics<parallel>, #tpu.dimension_semantics<parallel>], iteration_bounds = array<i64: 2, 1>, scalar_prefetch = 0 : i64, scratch_operands = 0 : i64, tpu.core_type = #tpu.core_type<tc>, window_params = [{transform_indices = @transform_0, window_bounds = array<i64: 1, 3, 256>}, {transform_indices = @transform_1, window_bounds = array<i64: 1, 100, 256>}, {transform_indices = @transform_2, window_bounds = array<i64: 1, 1, 256>}]} {
    %c0 = arith.constant 0 : index
    %c0_0 = arith.constant 0 : index
    %c0_1 = arith.constant 0 : index
    %0 = vector.load %arg2[%c0, %c0_0, %c0_1] : memref<1x3x256xf32, #tpu.memory_space<vmem>>, vector<1x3x256xf32>
    %1 = vector.shape_cast %0 : vector<1x3x256xf32> to vector<3x256xf32>
    %cst = arith.constant 2.000000e+00 : f32
    %2 = vector.broadcast %cst : f32 to vector<3x256xf32>
    %3 = arith.mulf %1, %2 : vector<3x256xf32>
    %cst_2 = arith.constant 1.000000e+00 : f32
    %4 = vector.broadcast %cst_2 : f32 to vector<3x256xf32>
    %5 = arith.subf %3, %4 : vector<3x256xf32>
    %c0_3 = arith.constant 0 : index
    %c0_4 = arith.constant 0 : index
    %c0_5 = arith.constant 0 : index
    %6 = vector.load %arg3[%c0_3, %c0_4, %c0_5] : memref<1x100x256xf32, #tpu.memory_space<vmem>>, vector<1x10x256xf32>
    %7 = vector.shape_cast %6 : vector<1x10x256xf32> to vector<10x256xf32>
    %c0_6 = arith.constant 0 : index
    %c20 = arith.constant 20 : index
    %c0_7 = arith.constant 0 : index
    %8 = vector.load %arg3[%c0_6, %c20, %c0_7] : memref<1x100x256xf32, #tpu.memory_space<vmem>>, vector<1x10x256xf32>
    %9 = vector.shape_cast %8 : vector<1x10x256xf32> to vector<10x256xf32>
    %c0_8 = arith.constant 0 : index
    %c50 = arith.constant 50 : index
    %c0_9 = arith.constant 0 : index
    %10 = vector.load %arg3[%c0_8, %c50, %c0_9] : memref<1x100x256xf32, #tpu.memory_space<vmem>>, vector<1x10x256xf32>
    %11 = vector.shape_cast %10 : vector<1x10x256xf32> to vector<10x256xf32>
    %c0_10 = arith.constant 0 : index
    %c80 = arith.constant 80 : index
    %c0_11 = arith.constant 0 : index
    %12 = vector.load %arg3[%c0_10, %c80, %c0_11] : memref<1x100x256xf32, #tpu.memory_space<vmem>>, vector<1x10x256xf32>
    %13 = vector.shape_cast %12 : vector<1x10x256xf32> to vector<10x256xf32>
    %14 = tpu.concatenate %9, %11, %13 in 0 : vector<10x256xf32>, vector<10x256xf32>, vector<10x256xf32> -> vector<30x256xf32>
    %cst_12 = arith.constant -7.000000e+00 : f32
    %15 = vector.broadcast %cst_12 : f32 to vector<30x256xf32>
    %16 = arith.maximumf %14, %15 : vector<30x256xf32>
    %c0_13 = arith.constant 0 : index
    %c30 = arith.constant 30 : index
    %c0_14 = arith.constant 0 : index
    %17 = vector.load %arg3[%c0_13, %c30, %c0_14] : memref<1x100x256xf32, #tpu.memory_space<vmem>>, vector<1x10x256xf32>
    %18 = vector.shape_cast %17 : vector<1x10x256xf32> to vector<10x256xf32>
    %c0_15 = arith.constant 0 : index
    %c60 = arith.constant 60 : index
    %c0_16 = arith.constant 0 : index
    %19 = vector.load %arg3[%c0_15, %c60, %c0_16] : memref<1x100x256xf32, #tpu.memory_space<vmem>>, vector<1x10x256xf32>
    %20 = vector.shape_cast %19 : vector<1x10x256xf32> to vector<10x256xf32>
    %c0_17 = arith.constant 0 : index
    %c90 = arith.constant 90 : index
    %c0_18 = arith.constant 0 : index
    %21 = vector.load %arg3[%c0_17, %c90, %c0_18] : memref<1x100x256xf32, #tpu.memory_space<vmem>>, vector<1x10x256xf32>
    %22 = vector.shape_cast %21 : vector<1x10x256xf32> to vector<10x256xf32>
    %23 = tpu.concatenate %18, %20, %22 in 0 : vector<10x256xf32>, vector<10x256xf32>, vector<10x256xf32> -> vector<30x256xf32>
    %24 = math.tanh %23 : vector<30x256xf32>
    %25 = vector.extract_strided_slice %5 {offsets = [0, 0], sizes = [1, 256], strides = [1, 1]} : vector<3x256xf32> to vector<1x256xf32>
    %26 = vector.extract_strided_slice %5 {offsets = [1, 0], sizes = [1, 256], strides = [1, 1]} : vector<3x256xf32> to vector<1x256xf32>
    %c0_19 = arith.constant 0 : index
    %c10 = arith.constant 10 : index
    %c0_20 = arith.constant 0 : index
    %27 = vector.load %arg3[%c0_19, %c10, %c0_20] : memref<1x100x256xf32, #tpu.memory_space<vmem>>, vector<1x10x256xf32>
    %28 = vector.shape_cast %27 : vector<1x10x256xf32> to vector<10x256xf32>
    %c0_21 = arith.constant 0 : index
    %c40 = arith.constant 40 : index
    %c0_22 = arith.constant 0 : index
    %29 = vector.load %arg3[%c0_21, %c40, %c0_22] : memref<1x100x256xf32, #tpu.memory_space<vmem>>, vector<1x10x256xf32>
    %30 = vector.shape_cast %29 : vector<1x10x256xf32> to vector<10x256xf32>
    %31 = vector.extract_strided_slice %24 {offsets = [0, 0], sizes = [10, 256], strides = [1, 1]} : vector<30x256xf32> to vector<10x256xf32>
    %32 = vector.broadcast %25 : vector<1x256xf32> to vector<10x256xf32>
    %33 = arith.mulf %31, %32 : vector<10x256xf32>
    %34 = arith.addf %30, %33 : vector<10x256xf32>
    %c0_23 = arith.constant 0 : index
    %c70 = arith.constant 70 : index
    %c0_24 = arith.constant 0 : index
    %35 = vector.load %arg3[%c0_23, %c70, %c0_24] : memref<1x100x256xf32, #tpu.memory_space<vmem>>, vector<1x10x256xf32>
    %36 = vector.shape_cast %35 : vector<1x10x256xf32> to vector<10x256xf32>
    %37 = vector.extract_strided_slice %24 {offsets = [10, 0], sizes = [10, 256], strides = [1, 1]} : vector<30x256xf32> to vector<10x256xf32>
    %38 = vector.broadcast %25 : vector<1x256xf32> to vector<10x256xf32>
    %39 = arith.mulf %37, %38 : vector<10x256xf32>
    %40 = arith.addf %36, %39 : vector<10x256xf32>
    %41 = vector.extract_strided_slice %24 {offsets = [20, 0], sizes = [10, 256], strides = [1, 1]} : vector<30x256xf32> to vector<10x256xf32>
    %42 = vector.broadcast %26 : vector<1x256xf32> to vector<10x256xf32>
    %43 = arith.mulf %41, %42 : vector<10x256xf32>
    %44 = arith.addf %40, %43 : vector<10x256xf32>
    %45 = tpu.concatenate %28, %34, %44 in 0 : vector<10x256xf32>, vector<10x256xf32>, vector<10x256xf32> -> vector<30x256xf32>
    %46 = vector.extract_strided_slice %5 {offsets = [0, 0], sizes = [1, 256], strides = [1, 1]} : vector<3x256xf32> to vector<1x256xf32>
    %47 = vector.shape_cast %46 : vector<1x256xf32> to vector<1x256xf32>
    %48 = vector.broadcast %47 : vector<1x256xf32> to vector<10x256xf32>
    %49 = vector.extract_strided_slice %5 {offsets = [1, 0], sizes = [1, 256], strides = [1, 1]} : vector<3x256xf32> to vector<1x256xf32>
    %50 = vector.shape_cast %49 : vector<1x256xf32> to vector<1x256xf32>
    %51 = vector.broadcast %50 : vector<1x256xf32> to vector<10x256xf32>
    %52 = vector.extract_strided_slice %5 {offsets = [2, 0], sizes = [1, 256], strides = [1, 1]} : vector<3x256xf32> to vector<1x256xf32>
    %53 = vector.shape_cast %52 : vector<1x256xf32> to vector<1x256xf32>
    %54 = vector.broadcast %53 : vector<1x256xf32> to vector<10x256xf32>
    %55 = tpu.concatenate %48, %51, %54 in 0 : vector<10x256xf32>, vector<10x256xf32>, vector<10x256xf32> -> vector<30x256xf32>
    %cst_25 = arith.constant 9.990000e-01 : f32
    %56 = vector.broadcast %cst_25 : f32 to vector<30x256xf32>
    %57 = arith.cmpf ogt, %55, %56 : vector<30x256xf32>
    %cst_26 = arith.constant -9.990000e-01 : f32
    %58 = vector.broadcast %cst_26 : f32 to vector<30x256xf32>
    %59 = arith.cmpf olt, %55, %58 : vector<30x256xf32>
    %60 = arith.subf %55, %45 : vector<30x256xf32>
    %cst_27 = arith.constant 0.000000e+00 : f32
    %61 = vector.broadcast %cst_27 : f32 to vector<30x256xf32>
    %62 = arith.subf %61, %16 : vector<30x256xf32>
    %63 = math.exp %62 : vector<30x256xf32>
    %cst_28 = arith.constant 0.00392156886 : f32
    %64 = vector.broadcast %cst_28 : f32 to vector<30x256xf32>
    %65 = arith.addf %60, %64 : vector<30x256xf32>
    %66 = arith.mulf %63, %65 : vector<30x256xf32>
    %cst_29 = arith.constant 0.00392156886 : f32
    %67 = vector.broadcast %cst_29 : f32 to vector<30x256xf32>
    %68 = arith.subf %60, %67 : vector<30x256xf32>
    %69 = arith.mulf %63, %68 : vector<30x256xf32>
    %70 = arith.mulf %63, %60 : vector<30x256xf32>
    %cst_30 = arith.constant 0.000000e+00 : f32
    %71 = vector.broadcast %cst_30 : f32 to vector<30x256xf32>
    %72 = arith.maximumf %66, %71 : vector<30x256xf32>
    %73 = vector.broadcast %cst_30 : f32 to vector<30x256xf32>
    %74 = arith.subf %66, %73 : vector<30x256xf32>
    %75 = arith.cmpf one, %74, %74 : vector<30x256xf32>
    %76 = vector.broadcast %cst_30 : f32 to vector<30x256xf32>
    %77 = arith.addf %66, %76 : vector<30x256xf32>
    %78 = math.absf %74 : vector<30x256xf32>
    %cst_31 = arith.constant 0.000000e+00 : f32
    %79 = vector.broadcast %cst_31 : f32 to vector<30x256xf32>
    %80 = arith.subf %79, %78 : vector<30x256xf32>
    %81 = math.exp %80 : vector<30x256xf32>
    %82 = math.log1p %81 : vector<30x256xf32>
    %83 = arith.addf %72, %82 : vector<30x256xf32>
    %84 = arith.select %75, %77, %83 : vector<30x256xi1>, vector<30x256xf32>
    %cst_32 = arith.constant 0.000000e+00 : f32
    %85 = vector.broadcast %cst_32 : f32 to vector<30x256xf32>
    %86 = arith.maximumf %69, %85 : vector<30x256xf32>
    %87 = vector.broadcast %cst_32 : f32 to vector<30x256xf32>
    %88 = arith.subf %69, %87 : vector<30x256xf32>
    %89 = arith.cmpf one, %88, %88 : vector<30x256xf32>
    %90 = vector.broadcast %cst_32 : f32 to vector<30x256xf32>
    %91 = arith.addf %69, %90 : vector<30x256xf32>
    %92 = math.absf %88 : vector<30x256xf32>
    %cst_33 = arith.constant 0.000000e+00 : f32
    %93 = vector.broadcast %cst_33 : f32 to vector<30x256xf32>
    %94 = arith.subf %93, %92 : vector<30x256xf32>
    %95 = math.exp %94 : vector<30x256xf32>
    %96 = math.log1p %95 : vector<30x256xf32>
    %97 = arith.addf %86, %96 : vector<30x256xf32>
    %98 = arith.select %89, %91, %97 : vector<30x256xi1>, vector<30x256xf32>
    %99 = arith.subf %66, %84 : vector<30x256xf32>
    %cst_34 = arith.constant 0.000000e+00 : f32
    %100 = vector.broadcast %cst_34 : f32 to vector<30x256xf32>
    %101 = arith.subf %100, %98 : vector<30x256xf32>
    %102 = arith.subf %69, %98 : vector<30x256xf32>
    %103 = arith.subf %102, %99 : vector<30x256xf32>
    %cst_35 = arith.constant 0.000000e+00 : f32
    %104 = vector.broadcast %cst_35 : f32 to vector<30x256xf32>
    %105 = arith.minimumf %103, %104 : vector<30x256xf32>
    %106 = math.exp %105 : vector<30x256xf32>
    %cst_36 = arith.constant 1.000000e+00 : f32
    %107 = vector.broadcast %cst_36 : f32 to vector<30x256xf32>
    %108 = arith.subf %107, %106 : vector<30x256xf32>
    %cst_37 = arith.constant 9.99999996E-13 : f32
    %109 = vector.broadcast %cst_37 : f32 to vector<30x256xf32>
    %110 = arith.maximumf %108, %109 : vector<30x256xf32>
    %111 = math.log %110 : vector<30x256xf32>
    %112 = arith.addf %99, %111 : vector<30x256xf32>
    %113 = arith.subf %70, %16 : vector<30x256xf32>
    %cst_38 = arith.constant 0.000000e+00 : f32
    %114 = vector.broadcast %cst_38 : f32 to vector<30x256xf32>
    %115 = arith.maximumf %70, %114 : vector<30x256xf32>
    %116 = vector.broadcast %cst_38 : f32 to vector<30x256xf32>
    %117 = arith.subf %70, %116 : vector<30x256xf32>
    %118 = arith.cmpf one, %117, %117 : vector<30x256xf32>
    %119 = vector.broadcast %cst_38 : f32 to vector<30x256xf32>
    %120 = arith.addf %70, %119 : vector<30x256xf32>
    %121 = math.absf %117 : vector<30x256xf32>
    %cst_39 = arith.constant 0.000000e+00 : f32
    %122 = vector.broadcast %cst_39 : f32 to vector<30x256xf32>
    %123 = arith.subf %122, %121 : vector<30x256xf32>
    %124 = math.exp %123 : vector<30x256xf32>
    %125 = math.log1p %124 : vector<30x256xf32>
    %126 = arith.addf %115, %125 : vector<30x256xf32>
    %127 = arith.select %118, %120, %126 : vector<30x256xi1>, vector<30x256xf32>
    %cst_40 = arith.constant 2.000000e+00 : f32
    %128 = vector.broadcast %cst_40 : f32 to vector<30x256xf32>
    %129 = arith.mulf %128, %127 : vector<30x256xf32>
    %130 = arith.subf %113, %129 : vector<30x256xf32>
    %cst_41 = arith.constant -11.5129251 : f32
    %131 = vector.broadcast %cst_41 : f32 to vector<30x256xf32>
    %132 = arith.cmpf ogt, %112, %131 : vector<30x256xf32>
    %cst_42 = arith.constant 4.8481164 : f32
    %133 = vector.broadcast %cst_42 : f32 to vector<30x256xf32>
    %134 = arith.subf %130, %133 : vector<30x256xf32>
    %135 = arith.select %132, %112, %134 : vector<30x256xi1>, vector<30x256xf32>
    %136 = arith.select %57, %101, %135 : vector<30x256xi1>, vector<30x256xf32>
    %137 = arith.select %59, %99, %136 : vector<30x256xi1>, vector<30x256xf32>
    %138 = vector.extract_strided_slice %137 {offsets = [0, 0], sizes = [10, 256], strides = [1, 1]} : vector<30x256xf32> to vector<10x256xf32>
    %139 = vector.extract_strided_slice %137 {offsets = [10, 0], sizes = [10, 256], strides = [1, 1]} : vector<30x256xf32> to vector<10x256xf32>
    %140 = arith.addf %138, %139 : vector<10x256xf32>
    %141 = vector.extract_strided_slice %137 {offsets = [20, 0], sizes = [10, 256], strides = [1, 1]} : vector<30x256xf32> to vector<10x256xf32>
    %142 = arith.addf %140, %141 : vector<10x256xf32>
    %cst_43 = arith.constant dense<0xFF800000> : vector<256xf32>
    %143 = vector.multi_reduction <maximumf>, %7, %cst_43 [0] : vector<10x256xf32> to vector<256xf32>
    %144 = vector.shape_cast %143 : vector<256xf32> to vector<1x256xf32>
    %145 = vector.broadcast %144 : vector<1x256xf32> to vector<10x256xf32>
    %146 = arith.subf %7, %145 : vector<10x256xf32>
    %147 = math.exp %146 : vector<10x256xf32>
    %cst_44 = arith.constant dense<0.000000e+00> : vector<256xf32>
    %148 = vector.multi_reduction <add>, %147, %cst_44 [0] : vector<10x256xf32> to vector<256xf32>
    %149 = vector.shape_cast %148 : vector<256xf32> to vector<1x256xf32>
    %150 = math.log %149 : vector<1x256xf32>
    %151 = arith.addf %144, %150 : vector<1x256xf32>
    %152 = vector.broadcast %151 : vector<1x256xf32> to vector<10x256xf32>
    %153 = arith.subf %7, %152 : vector<10x256xf32>
    %154 = arith.addf %142, %153 : vector<10x256xf32>
    %cst_45 = arith.constant dense<0xFF800000> : vector<256xf32>
    %155 = vector.multi_reduction <maximumf>, %154, %cst_45 [0] : vector<10x256xf32> to vector<256xf32>
    %156 = vector.shape_cast %155 : vector<256xf32> to vector<1x256xf32>
    %157 = vector.broadcast %156 : vector<1x256xf32> to vector<10x256xf32>
    %158 = arith.subf %154, %157 : vector<10x256xf32>
    %159 = math.exp %158 : vector<10x256xf32>
    %cst_46 = arith.constant dense<0.000000e+00> : vector<256xf32>
    %160 = vector.multi_reduction <add>, %159, %cst_46 [0] : vector<10x256xf32> to vector<256xf32>
    %161 = vector.shape_cast %160 : vector<256xf32> to vector<1x256xf32>
    %162 = math.log %161 : vector<1x256xf32>
    %163 = arith.addf %156, %162 : vector<1x256xf32>
    %c0_47 = arith.constant 0 : index
    %c0_48 = arith.constant 0 : index
    %c0_49 = arith.constant 0 : index
    %164 = vector.load %arg4[%c0_47, %c0_48, %c0_49] : memref<1x1x256xf32, #tpu.memory_space<vmem>>, vector<1x1x256xf32>
    %165 = vector.shape_cast %164 : vector<1x1x256xf32> to vector<1x256xf32>
    %166 = vector.shape_cast %163 : vector<1x256xf32> to vector<1x1x256xf32>
    tpu.vector_store %arg4[%c0_47, %c0_48, %c0_49], %166 {strides = array<i32>} : memref<1x1x256xf32, #tpu.memory_space<vmem>>, vector<1x1x256xf32>,
    return
  }
  func.func @transform_0(%arg0: i32, %arg1: i32) -> (i32, i32, i32) {
    %c0_i32 = arith.constant 0 : i32
    %c0_i32_0 = arith.constant 0 : i32
    return %arg0, %c0_i32, %arg1 : i32, i32, i32
  }
  func.func @transform_1(%arg0: i32, %arg1: i32) -> (i32, i32, i32) {
    %c0_i32 = arith.constant 0 : i32
    %c0_i32_0 = arith.constant 0 : i32
    return %arg0, %c0_i32, %arg1 : i32, i32, i32
  }
  func.func @transform_2(%arg0: i32, %arg1: i32) -> (i32, i32, i32) {
    %c0_i32 = arith.constant 0 : i32
    %c0_i32_0 = arith.constant 0 : i32
    return %arg0, %c0_i32, %arg1 : i32, i32, i32
  }
}

</mosaic_0001>

<llo_original>
// kernel: tpu_custom_call.1
$region0: #{tpu_custom_call.1}
  #allocation0 [shape = 'u32[]', space=smem, size = 0x4, offset = 0x4, fixed_abs, tag = 'smem constant byte address 0x4 - core index']
  #allocation1 [shape = 'u32[144,128]{1,0:T(1,128)}', space=vmem, size = 0x12000, scoped, tag = 'internal scratch']
  %s0 = inlined_call_operand.vmem [shape: f32[2,3,256], index: 0, kind: input, shape index: {}]
  %s1 = inlined_call_operand.vmem [shape: f32[2,100,256], index: 1, kind: input, shape index: {}]
  %s2 = inlined_call_operand.hbm [shape: f32[2,1,256], index: 2, kind: output, shape index: {}]
  %s3 = sld [smem:[#allocation0]]
  $region41: #{tpu_custom_call.1} parent=0
    _
  %s5 = ssub.s32 1, %s3
  %s6 = scalar_select 0, %s5, %s3
  $region1: #{tpu_custom_call.1} parent=0
    #allocation2 [shape = 'u8[2048]{0}', space=vmem, size = 0x800, scoped, tag = 'output window, operand 0']
    #allocation3 [shape = 's32[2]{0}', space=sflag, size = 0x8, scoped, tag = 'scoped memory for tpu_custom_call.1']
    %7 = vsyncpa [#allocation3], 0
    %s8 = scalar_lea.sflag [#allocation3], 1
    %9 = vsyncpa %s8, 0
    loop: start=0, step=1, limit=4
    $region2: #{tpu_custom_call.1} parent=1 // loop_pre_header
      _
    $region3: #{tpu_custom_call.1} parent=1 // loop_header
      %s11 = sphi 0, %s15
      %p12 = scmp.ge.s32.totalorder %s11, 4
      %s18 = sphi 0, %s30
      %s19 = sphi 0, %s26
      %s20 = sphi 0, %s18
      %s21 = sphi 0, %s19
      %s22 = sphi 0, %s20
      %s23 = sphi 0, %s21
      %s35 = sphi 0, %s37
      %s38 = sphi 0, %s35
      %s39 = sphi 0, %s38
      %s55 = sphi 0, %s39
      %s63 = sphi 0, %s65
      %s66 = sphi 0, %s63
      %s67 = sphi 0, %s66
      %s83 = sphi 0, %s67
      %s91 = sphi 0, %s93
      %s94 = sphi 0, %s91
      %s95 = sphi 0, %s94
      %s111 = sphi 0, %s95
    $region4: #{tpu_custom_call.1} parent=1 // loop_header_branch
      %14 = sbr.rel (%p12) target = $region8
    $region5: #{tpu_custom_call.1} parent=1 // loop_body
      %s16 = ssub.s32 %s11, 1
      %s17 = ssub.s32 %s11, 2
      %s24 = sadd.s32 1, %s19
      %p25 = scmp.ge.s32.totalorder %s24, 1
      %s26 = scalar_select %p25, 0, %s24
      %s27 = sadd.s32 1, %s18
      %s28 = scalar_select %p25, %s27, %s18
      %p29 = scmp.ge.s32.totalorder %s28, 2
      %s30 = scalar_select %p29, 0, %s28
      %s31 = ssub.s32 %s18, %s30
      %s32 = ssub.s32 %s19, %s26
      %s33 = sor.u32 %s31, %s32
      %p34 = scmp.eq.s32.totalorder %s33, 0
      %s36 = sadd.s32 %s35, 1
      %s37 = scalar_select %p34, %s35, %s36
      %p40 = pneg %p34
      %p41 = scmp.eq.s32.totalorder %s11, 1
      %p42 = por %p40, %p41
      %p43 = scmp.ne.s32.totalorder %s35, %s38
      %p44 = scmp.eq.s32.totalorder %s11, 0
      %p45 = por %p43, %p44
      %p46 = scmp.ne.s32.totalorder %s35, %s38
      %p47 = scmp.eq.s32.totalorder %s16, 1
      %p48 = por %p46, %p47
      %p49 = scmp.ne.s32.totalorder %s38, %s39
      %p50 = scmp.eq.s32.totalorder %s16, 0
      %p51 = por %p49, %p50
      %p52 = scmp.ne.s32.totalorder %s38, %s39
      %p53 = scmp.eq.s32.totalorder %s17, 1
      %p54 = por %p52, %p53
      %p56 = scmp.ne.s32.totalorder %s39, %s55
      %p57 = scmp.eq.s32.totalorder %s17, 0
      %p58 = por %p56, %p57
      %s59 = ssub.s32 %s18, %s30
      %s60 = ssub.s32 %s19, %s26
      %s61 = sor.u32 %s59, %s60
      %p62 = scmp.eq.s32.totalorder %s61, 0
      %s64 = sadd.s32 %s63, 1
      %s65 = scalar_select %p62, %s63, %s64
      %p68 = pneg %p62
      %p69 = scmp.eq.s32.totalorder %s11, 1
      %p70 = por %p68, %p69
      %p71 = scmp.ne.s32.totalorder %s63, %s66
      %p72 = scmp.eq.s32.totalorder %s11, 0
      %p73 = por %p71, %p72
      %p74 = scmp.ne.s32.totalorder %s63, %s66
      %p75 = scmp.eq.s32.totalorder %s16, 1
      %p76 = por %p74, %p75
      %p77 = scmp.ne.s32.totalorder %s66, %s67
      %p78 = scmp.eq.s32.totalorder %s16, 0
      %p79 = por %p77, %p78
      %p80 = scmp.ne.s32.totalorder %s66, %s67
      %p81 = scmp.eq.s32.totalorder %s17, 1
      %p82 = por %p80, %p81
      %p84 = scmp.ne.s32.totalorder %s67, %s83
      %p85 = scmp.eq.s32.totalorder %s17, 0
      %p86 = por %p84, %p85
      %s87 = ssub.s32 %s18, %s30
      %s88 = ssub.s32 %s19, %s26
      %s89 = sor.u32 %s87, %s88
      %p90 = scmp.eq.s32.totalorder %s89, 0
      %s92 = sadd.s32 %s91, 1
      %s93 = scalar_select %p90, %s91, %s92
      %p96 = pneg %p90
      %p97 = scmp.eq.s32.totalorder %s11, 1
      %p98 = por %p96, %p97
      %p99 = scmp.ne.s32.totalorder %s91, %s94
      %p100 = scmp.eq.s32.totalorder %s11, 0
      %p101 = por %p99, %p100
      %p102 = scmp.ne.s32.totalorder %s91, %s94
      %p103 = scmp.eq.s32.totalorder %s16, 1
      %p104 = por %p102, %p103
      %p105 = scmp.ne.s32.totalorder %s94, %s95
      %p106 = scmp.eq.s32.totalorder %s16, 0
      %p107 = por %p105, %p106
      %p108 = scmp.ne.s32.totalorder %s94, %s95
      %p109 = scmp.eq.s32.totalorder %s17, 1
      %p110 = por %p108, %p109
      %p112 = scmp.ne.s32.totalorder %s95, %s111
      %p113 = scmp.eq.s32.totalorder %s17, 0
      %p114 = por %p112, %p113
      %p115 = scmp.le.s32.totalorder 1, %s11
      %p116 = scmp.lt.s32.totalorder %s11, 3
      %p117 = pnand %p115, %p116
      %p118 = pneg %p117
      // Predicated region
      $region9: #{tpu_custom_call.1} parent=5 // pred_check
        _
      $region10: #{tpu_custom_call.1} parent=5 // pred_check_branch
        %120 = sbr.rel (%p117) target = $region12
      $region11: #{tpu_custom_call.1} parent=5 // pred_region
        %s121 = ssub.s32 %s11, 1
      $region12: #{tpu_custom_call.1} parent=5 // pred_fallthru
        _
      %p122 = scmp.lt.s32.totalorder %s11, 2
      // Predicated region
      $region13: #{tpu_custom_call.1} parent=5 // pred_check
        %p123 = pneg %p122
      $region14: #{tpu_custom_call.1} parent=5 // pred_check_branch
        %125 = sbr.rel (%p123) target = $region16
      $region15: #{tpu_custom_call.1} parent=5 // pred_region
        // Predicated region
        $region17: #{tpu_custom_call.1} parent=15 // pred_check
          %p126 = pneg %p45
        $region18: #{tpu_custom_call.1} parent=15 // pred_check_branch
          %128 = sbr.rel (%p126) target = $region20
        $region19: #{tpu_custom_call.1} parent=15 // pred_region
          %s129 = smul.u32 2, %s19
          %p130 = scmp.lt.s32.totalorder %s18, 1
          %s131 = scalar_select %p130, %s18, 1
          %p132 = scmp.lt.s32.totalorder %s129, 1
          %s133 = scalar_select %p132, %s129, 1
          %s134 = smul.addr %s131, 2
          %s135 = sadd.s32 %s133, %s134
          %s136 = smul.addr %s135, 4
          %s137 = scalar_lea.vmem %s0, %s136
          %s138 = smul.u32 2, %s19
        $region20: #{tpu_custom_call.1} parent=15 // pred_fallthru
          _
        // Predicated region
        $region21: #{tpu_custom_call.1} parent=15 // pred_check
          %p139 = pneg %p73
        $region22: #{tpu_custom_call.1} parent=15 // pred_check_branch
          %141 = sbr.rel (%p139) target = $region24
        $region23: #{tpu_custom_call.1} parent=15 // pred_region
          %s142 = smul.u32 2, %s19
          %p143 = scmp.lt.s32.totalorder %s18, 1
          %s144 = scalar_select %p143, %s18, 1
          %p145 = scmp.lt.s32.totalorder %s142, 1
          %s146 = scalar_select %p145, %s142, 1
          %s147 = smul.addr %s144, 26
          %s148 = sadd.s32 %s146, %s147
          %s149 = smul.addr %s148, 8
          %s150 = scalar_lea.vmem %s1, %s149
          %s151 = smul.u32 2, %s19
        $region24: #{tpu_custom_call.1} parent=15 // pred_fallthru
          _
      $region16: #{tpu_custom_call.1} parent=5 // pred_fallthru
        _
      %p152 = scmp.le.s32.totalorder 1, %s11
      %p153 = scmp.lt.s32.totalorder %s11, 3
      %p154 = pnand %p152, %p153
      %p155 = pneg %p154
      // Predicated region
      $region25: #{tpu_custom_call.1} parent=5 // pred_check
        _
      $region26: #{tpu_custom_call.1} parent=5 // pred_check_branch
        %157 = sbr.rel (%p154) target = $region28
      $region27: #{tpu_custom_call.1} parent=5 // pred_region
        %s158 = ssub.s32 %s11, 1
        %s159 = smul.u32 2, %s21
        %p160 = scmp.lt.s32.totalorder %s20, 1
        %s161 = scalar_select %p160, %s20, 1
        %p162 = scmp.lt.s32.totalorder %s159, 1
        %s163 = scalar_select %p162, %s159, 1
        %s164 = smul.addr %s161, 2
        %s165 = sadd.s32 %s163, %s164
        %s166 = smul.addr %s165, 4
        %s167 = scalar_lea.vmem %s0, %s166
        %p168 = pneg %p51
        %p169 = pneg %p48
        %s170 = smul.u32 2, %s21
        %p171 = scmp.lt.s32.totalorder %s20, 1
        %s172 = scalar_select %p171, %s20, 1
        %p173 = scmp.lt.s32.totalorder %s170, 1
        %s174 = scalar_select %p173, %s170, 1
        %s175 = smul.addr %s172, 26
        %s176 = sadd.s32 %s174, %s175
        %s177 = smul.addr %s176, 8
        %s178 = scalar_lea.vmem %s1, %s177
        %p179 = pneg %p79
        %p180 = pneg %p76
        %p181 = pneg %p107
        %p182 = pneg %p104
        %s183 = sand.u32 %s94, 1
        %s184 = scalar_lea.sflag [#allocation3], %s183
        %s185 = sand.u32 %s94, 1
        %s186 = smul.addr %s185, 2
        %s187 = scalar_lea.vmem [#allocation2], %s186
        %s188 = smul.u32 2, %s21
        %p189 = scmp.lt.s32.totalorder %s20, 1
        %s190 = scalar_select %p189, %s20, 1
        %p191 = scmp.lt.s32.totalorder %s188, 1
        %s192 = scalar_select %p191, %s188, 1
        %s193 = smul.addr %s190, 2
        %s194 = sadd.s32 %s192, %s193
        %s195 = smul.addr %s194, 4
        %s196 = scalar_lea.vmem %s0, %s195
        %s197 = smul.u32 2, %s21
        %s198 = smul.u32 2, %s21
        %p199 = scmp.lt.s32.totalorder %s20, 1
        %s200 = scalar_select %p199, %s20, 1
        %p201 = scmp.lt.s32.totalorder %s198, 1
        %s202 = scalar_select %p201, %s198, 1
        %s203 = smul.addr %s200, 26
        %s204 = sadd.s32 %s202, %s203
        %s205 = smul.addr %s204, 8
        %s206 = scalar_lea.vmem %s1, %s205
        %s207 = smul.u32 2, %s21
        %s208 = smul.u32 2, %s21
        %v209 = vld [vmem:[%s196] sm:$0x77]
        %v210 = vmul.f32 %v209, 2.0
        %v211 = vsub.f32 %v210, 1.0
        %v212 = vld [vmem:[%s206] sm:$0xff]
        %v213 = vld [vmem:[%s206 + $0x8] sm:$0xff]
        %v214 = vld [vmem:[%s206 + $0x10] sm:$0x3]
        %v215 = vld [vmem:[%s206 + $0x18] sm:$0x3]
        %v216 = vld [vmem:[%s206 + $0x20] sm:$0xf0]
        %v217 = vld [vmem:[%s206 + $0x28] sm:$0xf0]
        %v218 = vld [vmem:[%s206 + $0x30] sm:$0x3f]
        %v219 = vld [vmem:[%s206 + $0x38] sm:$0x3f]
        %v220 = vld [vmem:[%s206 + $0x60] sm:$0xfc]
        %v221 = vld [vmem:[%s206 + $0x68] sm:$0xfc]
        %v222 = vld [vmem:[%s206 + $0x70] sm:$0xf]
        %v223 = vld [vmem:[%s206 + $0x78] sm:$0xf]
        %v224 = vld [vmem:[%s206 + $0xa0] sm:$0xff]
        %v225 = vld [vmem:[%s206 + $0xa8] sm:$0xff]
        %v226 = vld [vmem:[%s206 + $0xb0] sm:$0x3]
        %v227 = vld [vmem:[%s206 + $0xb8] sm:$0x3]
        %vm232 = vcmask 1043456
        %v233 = vrot.slane %v216, 4
        %v234 = vrot.slane %v218, 4
        %v235 = vsel %vm232, %v233, %v234
        %v236 = vrot.slane %v217, 4
        %v237 = vrot.slane %v219, 4
        %v238 = vsel %vm232, %v236, %v237
        %v247 = vrot.slane %v224, 4
        %v248 = vrot.slane %v225, 4
        %v249 = vrot.slane %v226, 4
        %v250 = vsel %vm232, %v247, %v249
        %v251 = vrot.slane %v227, 4
        %v252 = vsel %vm232, %v248, %v251
        %vm257 = vcmask 1041408
        %v258 = vsel %vm257, %v234, %v220
        %v259 = vsel %vm257, %v237, %v221
        %v260 = vsel %vm232, %v222, %v247
        %v261 = vsel %vm232, %v223, %v248
        %v262 = vmax.f32 %v235, -7.0
        %v263 = vmax.f32 %v238, -7.0
        %v264 = vmax.f32 %v258, -7.0
        %v265 = vmax.f32 %v259, -7.0
        %v266 = vmax.f32 %v260, -7.0
        %v267 = vmax.f32 %v261, -7.0
        %v268 = vmax.f32 %v250, -7.0
        %v269 = vmax.f32 %v252, -7.0
        %v270 = vld [vmem:[%s206 + $0x30] sm:$0xc0]
        %v271 = vld [vmem:[%s206 + $0x38] sm:$0xc0]
        %v272 = vld [vmem:[%s206 + $0x40] sm:$0xff]
        %v273 = vld [vmem:[%s206 + $0x48] sm:$0xff]
        %v274 = vld [vmem:[%s206 + $0x70] sm:$0xf0]
        %v275 = vld [vmem:[%s206 + $0x78] sm:$0xf0]
        %v276 = vld [vmem:[%s206 + $0x80] sm:$0x3f]
        %v277 = vld [vmem:[%s206 + $0x88] sm:$0x3f]
        %v278 = vld [vmem:[%s206 + $0xb0] sm:$0xfc]
        %v279 = vld [vmem:[%s206 + $0xb8] sm:$0xfc]
        %v280 = vld [vmem:[%s206 + $0xc0] sm:$0xf]
        %v281 = vld [vmem:[%s206 + $0xc8] sm:$0xf]
        %v286 = vrot.slane %v270, 6
        %v287 = vrot.slane %v272, 6
        %v288 = vsel %vm257, %v286, %v287
        %v289 = vrot.slane %v271, 6
        %v290 = vrot.slane %v273, 6
        %v291 = vsel %vm257, %v289, %v290
        %vm300 = vcmask 1045504
        %v301 = vrot.slane %v274, 2
        %v302 = vrot.slane %v276, 2
        %v303 = vsel %vm300, %v301, %v302
        %v304 = vrot.slane %v275, 2
        %v305 = vrot.slane %v277, 2
        %v306 = vsel %vm300, %v304, %v305
        %v315 = vrot.slane %v278, 6
        %v316 = vrot.slane %v279, 6
        %v317 = vrot.slane %v280, 6
        %v318 = vsel %vm257, %v315, %v317
        %v319 = vrot.slane %v281, 6
        %v320 = vsel %vm257, %v316, %v319
        %v325 = vsel %vm257, %v287, %v303
        %v326 = vsel %vm257, %v290, %v306
        %v327 = vsel %vm232, %v302, %v315
        %v328 = vsel %vm232, %v305, %v316
        %v329 = vtanh.pop %v288
        %v330 = vtanh.pop %v291
        %v331 = vtanh.pop %v325
        %v332 = vtanh.pop %v326
        %v333 = vtanh.pop %v327
        %v334 = vtanh.pop %v328
        %v335 = vtanh.pop %v318
        %v336 = vtanh.pop %v320
        %v337 = vld [vmem:[%s206 + $0x10] sm:$0xfc]
        %v338 = vld [vmem:[%s206 + $0x18] sm:$0xfc]
        %v339 = vld [vmem:[%s206 + $0x20] sm:$0xf]
        %v340 = vld [vmem:[%s206 + $0x28] sm:$0xf]
        %v341 = vld [vmem:[%s206 + $0x50] sm:$0xff]
        %v342 = vld [vmem:[%s206 + $0x58] sm:$0xff]
        %v343 = vld [vmem:[%s206 + $0x60] sm:$0x3]
        %v344 = vld [vmem:[%s206 + $0x68] sm:$0x3]
        %v346 = vlaneseq
        %v347 = vshrl.u32 %v346, 7
        %v348 = vsub.s32 0, %v347
        %v349 = vrot.slane %v211, %v348
        %v350 = vlaneseq
        %v351 = vshrl.u32 %v350, 7
        %v352 = vsub.s32 4, %v351
        %v353 = vrot.slane %v211, %v352
        %v356 = vlaneseq
        %v357 = vshrl.u32 %v356, 7
        %v358 = vsub.s32 0, %v357
        %v359 = vrot.slane %v349, %v358
        %v360 = vlaneseq
        %v361 = vshrl.u32 %v360, 7
        %v362 = vsub.s32 0, %v361
        %v363 = vrot.slane %v353, %v362
        %v364 = vmul.f32 %v329, %v359
        %v365 = vmul.f32 %v330, %v363
        %v366 = vmul.f32 %v331, %v359
        %v367 = vmul.f32 %v332, %v363
        %v368 = vadd.f32 %v341, %v364
        %v369 = vadd.f32 %v342, %v365
        %v370 = vadd.f32 %v343, %v366
        %v371 = vadd.f32 %v344, %v367
        %v372 = vld [vmem:[%s206 + $0x80] sm:$0xc0]
        %v373 = vld [vmem:[%s206 + $0x88] sm:$0xc0]
        %v374 = vld [vmem:[%s206 + $0x90] sm:$0xff]
        %v375 = vld [vmem:[%s206 + $0x98] sm:$0xff]
        %v376 = vmul.f32 %v333, %v359
        %v377 = vmul.f32 %v334, %v363
        %v382 = vrot.slane %v366, 4
        %v383 = vrot.slane %v367, 4
        %v384 = vrot.slane %v376, 4
        %v385 = vsel %vm232, %v382, %v384
        %v386 = vrot.slane %v377, 4
        %v387 = vsel %vm232, %v383, %v386
        %v392 = vadd.f32 %v372, %v382
        %v393 = vadd.f32 %v373, %v383
        %v394 = vadd.f32 %v374, %v385
        %v395 = vadd.f32 %v375, %v387
        %v396 = vlaneseq
        %v397 = vshrl.u32 %v396, 7
        %v398 = vsub.s32 1, %v397
        %v399 = vrot.slane %v211, %v398
        %v400 = vlaneseq
        %v401 = vshrl.u32 %v400, 7
        %v402 = vsub.s32 5, %v401
        %v403 = vrot.slane %v211, %v402
        %v406 = vlaneseq
        %v407 = vshrl.u32 %v406, 7
        %v408 = vsub.s32 1, %v407
        %v409 = vrot.slane %v399, %v408
        %v410 = vlaneseq
        %v411 = vshrl.u32 %v410, 7
        %v412 = vsub.s32 1, %v411
        %v413 = vrot.slane %v403, %v412
        %v414 = vmul.f32 %v333, %v409
        %v415 = vmul.f32 %v334, %v413
        %v416 = vmul.f32 %v335, %v409
        %v417 = vmul.f32 %v336, %v413
        %v422 = vrot.slane %v414, 6
        %v423 = vrot.slane %v415, 6
        %v424 = vrot.slane %v416, 6
        %v425 = vsel %vm257, %v422, %v424
        %v426 = vrot.slane %v417, 6
        %v427 = vsel %vm257, %v423, %v426
        %v432 = vadd.f32 %v392, %v422
        %v433 = vadd.f32 %v393, %v423
        %v434 = vadd.f32 %v394, %v425
        %v435 = vadd.f32 %v395, %v427
        %v440 = vrot.slane %v337, 2
        %v441 = vrot.slane %v339, 2
        %v442 = vsel %vm300, %v440, %v441
        %v443 = vrot.slane %v338, 2
        %v444 = vrot.slane %v340, 2
        %v445 = vsel %vm300, %v443, %v444
        %v454 = vrot.slane %v368, 6
        %v455 = vrot.slane %v369, 6
        %v456 = vrot.slane %v370, 6
        %v457 = vsel %vm257, %v454, %v456
        %v458 = vrot.slane %v371, 6
        %v459 = vsel %vm257, %v455, %v458
        %v468 = vrot.slane %v432, 2
        %v469 = vrot.slane %v434, 2
        %v470 = vsel %vm300, %v468, %v469
        %v471 = vrot.slane %v433, 2
        %v472 = vrot.slane %v435, 2
        %v473 = vsel %vm300, %v471, %v472
        %v478 = vsel %vm257, %v441, %v454
        %v479 = vsel %vm257, %v444, %v455
        %v480 = vsel %vm232, %v457, %v470
        %v481 = vsel %vm232, %v459, %v473
        %v482 = vlaneseq
        %v483 = vshrl.u32 %v482, 7
        %v484 = vsub.s32 2, %v483
        %v485 = vrot.slane %v211, %v484
        %v486 = vlaneseq
        %v487 = vshrl.u32 %v486, 7
        %v488 = vsub.s32 6, %v487
        %v489 = vrot.slane %v211, %v488
        %v492 = vlaneseq
        %v493 = vshrl.u32 %v492, 7
        %v494 = vsub.s32 2, %v493
        %v495 = vrot.slane %v485, %v494
        %v496 = vlaneseq
        %v497 = vshrl.u32 %v496, 7
        %v498 = vsub.s32 2, %v497
        %v499 = vrot.slane %v489, %v498
        %v500 = vsel %vm257, %v359, %v409
        %v501 = vsel %vm257, %v363, %v413
        %v502 = vsel %vm232, %v409, %v495
        %v503 = vsel %vm232, %v413, %v499
        %vm504 = vcmp.gt.f32.partialorder %v359, 0.999
        %vm505 = vcmp.gt.f32.partialorder %v363, 0.999
        %vm506 = vcmp.gt.f32.partialorder %v500, 0.999
        %vm507 = vcmp.gt.f32.partialorder %v501, 0.999
        %vm508 = vcmp.gt.f32.partialorder %v502, 0.999
        %vm509 = vcmp.gt.f32.partialorder %v503, 0.999
        %vm510 = vcmp.gt.f32.partialorder %v495, 0.999
        %vm511 = vcmp.gt.f32.partialorder %v499, 0.999
        %vm512 = vcmp.lt.f32.partialorder %v359, -0.999
        %vm513 = vcmp.lt.f32.partialorder %v363, -0.999
        %vm514 = vcmp.lt.f32.partialorder %v500, -0.999
        %vm515 = vcmp.lt.f32.partialorder %v501, -0.999
        %vm516 = vcmp.lt.f32.partialorder %v502, -0.999
        %vm517 = vcmp.lt.f32.partialorder %v503, -0.999
        %vm518 = vcmp.lt.f32.partialorder %v495, -0.999
        %vm519 = vcmp.lt.f32.partialorder %v499, -0.999
        %v520 = vsub.f32 %v359, %v442
        %v521 = vsub.f32 %v363, %v445
        %v522 = vsub.f32 %v500, %v478
        %v523 = vsub.f32 %v501, %v479
        %v524 = vsub.f32 %v502, %v480
        %v525 = vsub.f32 %v503, %v481
        %v526 = vsub.f32 %v495, %v469
        %v527 = vsub.f32 %v499, %v472
        %v528 = vsub.f32 0.0, %v262
        %v529 = vsub.f32 0.0, %v263
        %v530 = vsub.f32 0.0, %v264
        %v531 = vsub.f32 0.0, %v265
        %v532 = vsub.f32 0.0, %v266
        %v533 = vsub.f32 0.0, %v267
        %v534 = vsub.f32 0.0, %v268
        %v535 = vsub.f32 0.0, %v269
        %v536 = vmul.f32 %v528, 1.442695
        %v537 = vpow.pop %v536
        %v538 = vmul.f32 %v529, 1.442695
        %v539 = vpow.pop %v538
        %v540 = vmul.f32 %v530, 1.442695
        %v541 = vpow.pop %v540
        %v542 = vmul.f32 %v531, 1.442695
        %v543 = vpow.pop %v542
        %v544 = vmul.f32 %v532, 1.442695
        %v545 = vpow.pop %v544
        %v546 = vmul.f32 %v533, 1.442695
        %v547 = vpow.pop %v546
        %v548 = vmul.f32 %v534, 1.442695
        %v549 = vpow.pop %v548
        %v550 = vmul.f32 %v535, 1.442695
        %v551 = vpow.pop %v550
        %v552 = vadd.f32 %v520, 0.003921569
        %v553 = vadd.f32 %v521, 0.003921569
        %v554 = vadd.f32 %v522, 0.003921569
        %v555 = vadd.f32 %v523, 0.003921569
        %v556 = vadd.f32 %v524, 0.003921569
        %v557 = vadd.f32 %v525, 0.003921569
        %v558 = vadd.f32 %v526, 0.003921569
        %v559 = vadd.f32 %v527, 0.003921569
        %v560 = vmul.f32 %v537, %v552
        %v561 = vmul.f32 %v539, %v553
        %v562 = vmul.f32 %v541, %v554
        %v563 = vmul.f32 %v543, %v555
        %v564 = vmul.f32 %v545, %v556
        %v565 = vmul.f32 %v547, %v557
        %v566 = vmul.f32 %v549, %v558
        %v567 = vmul.f32 %v551, %v559
        %v568 = vsub.f32 %v520, 0.003921569
        %v569 = vsub.f32 %v521, 0.003921569
        %v570 = vsub.f32 %v522, 0.003921569
        %v571 = vsub.f32 %v523, 0.003921569
        %v572 = vsub.f32 %v524, 0.003921569
        %v573 = vsub.f32 %v525, 0.003921569
        %v574 = vsub.f32 %v526, 0.003921569
        %v575 = vsub.f32 %v527, 0.003921569
        %v576 = vmul.f32 %v537, %v568
        %v577 = vmul.f32 %v539, %v569
        %v578 = vmul.f32 %v541, %v570
        %v579 = vmul.f32 %v543, %v571
        %v580 = vmul.f32 %v545, %v572
        %v581 = vmul.f32 %v547, %v573
        %v582 = vmul.f32 %v549, %v574
        %v583 = vmul.f32 %v551, %v575
        %v584 = vmul.f32 %v537, %v520
        %v585 = vmul.f32 %v539, %v521
        %v586 = vmul.f32 %v541, %v522
        %v587 = vmul.f32 %v543, %v523
        %v588 = vmul.f32 %v545, %v524
        %v589 = vmul.f32 %v547, %v525
        %v590 = vmul.f32 %v549, %v526
        %v591 = vmul.f32 %v551, %v527
        %v592 = vmax.f32 %v560, 0.0
        %v593 = vmax.f32 %v561, 0.0
        %v594 = vmax.f32 %v562, 0.0
        %v595 = vmax.f32 %v563, 0.0
        %v596 = vmax.f32 %v564, 0.0
        %v597 = vmax.f32 %v565, 0.0
        %v598 = vmax.f32 %v566, 0.0
        %v599 = vmax.f32 %v567, 0.0
        %vm600 = vcmp.ne.f32.partialorder %v560, %v560
        %vm601 = vcmp.ne.f32.partialorder %v561, %v561
        %vm602 = vcmp.ne.f32.partialorder %v562, %v562
        %vm603 = vcmp.ne.f32.partialorder %v563, %v563
        %vm604 = vcmp.ne.f32.partialorder %v564, %v564
        %vm605 = vcmp.ne.f32.partialorder %v565, %v565
        %vm606 = vcmp.ne.f32.partialorder %v566, %v566
        %vm607 = vcmp.ne.f32.partialorder %v567, %v567
        %v608 = vadd.f32 %v560, 0.0
        %v609 = vadd.f32 %v561, 0.0
        %v610 = vadd.f32 %v562, 0.0
        %v611 = vadd.f32 %v563, 0.0
        %v612 = vadd.f32 %v564, 0.0
        %v613 = vadd.f32 %v565, 0.0
        %v614 = vadd.f32 %v566, 0.0
        %v615 = vadd.f32 %v567, 0.0
        %v616 = vand.u32 2147483647, %v560
        %v617 = vand.u32 2147483647, %v561
        %v618 = vand.u32 2147483647, %v562
        %v619 = vand.u32 2147483647, %v563
        %v620 = vand.u32 2147483647, %v564
        %v621 = vand.u32 2147483647, %v565
        %v622 = vand.u32 2147483647, %v566
        %v623 = vand.u32 2147483647, %v567
        %v624 = vsub.f32 0.0, %v616
        %v625 = vsub.f32 0.0, %v617
        %v626 = vsub.f32 0.0, %v618
        %v627 = vsub.f32 0.0, %v619
        %v628 = vsub.f32 0.0, %v620
        %v629 = vsub.f32 0.0, %v621
        %v630 = vsub.f32 0.0, %v622
        %v631 = vsub.f32 0.0, %v623
        %v632 = vmul.f32 %v624, 1.442695
        %v633 = vpow.pop %v632
        %v634 = vmul.f32 %v625, 1.442695
        %v635 = vpow.pop %v634
        %v636 = vmul.f32 %v626, 1.442695
        %v637 = vpow.pop %v636
        %v638 = vmul.f32 %v627, 1.442695
        %v639 = vpow.pop %v638
        %v640 = vmul.f32 %v628, 1.442695
        %v641 = vpow.pop %v640
        %v642 = vmul.f32 %v629, 1.442695
        %v643 = vpow.pop %v642
        %v644 = vmul.f32 %v630, 1.442695
        %v645 = vpow.pop %v644
        %v646 = vmul.f32 %v631, 1.442695
        %v647 = vpow.pop %v646
        %v648 = vadd.f32 %v633, 1.0
        %v649 = vlog2.pop %v648
        %v650 = vmul.f32 %v649, 0.6931472
        %v651 = vmul.f32 -0.5, %v633
        %v652 = vadd.f32 %v651, 1.0
        %v653 = vmul.f32 %v652, %v633
        %v654 = vand.u32 2147483647, %v633
        %vm655 = vcmp.lt.f32.partialorder %v654, 0.0004427343
        %v656 = vsel %vm655, %v653, %v650
        %v657 = vadd.f32 %v635, 1.0
        %v658 = vlog2.pop %v657
        %v659 = vmul.f32 %v658, 0.6931472
        %v660 = vmul.f32 -0.5, %v635
        %v661 = vadd.f32 %v660, 1.0
        %v662 = vmul.f32 %v661, %v635
        %v663 = vand.u32 2147483647, %v635
        %vm664 = vcmp.lt.f32.partialorder %v663, 0.0004427343
        %v665 = vsel %vm664, %v662, %v659
        %v666 = vadd.f32 %v637, 1.0
        %v667 = vlog2.pop %v666
        %v668 = vmul.f32 %v667, 0.6931472
        %v669 = vmul.f32 -0.5, %v637
        %v670 = vadd.f32 %v669, 1.0
        %v671 = vmul.f32 %v670, %v637
        %v672 = vand.u32 2147483647, %v637
        %vm673 = vcmp.lt.f32.partialorder %v672, 0.0004427343
        %v674 = vsel %vm673, %v671, %v668
        %v675 = vadd.f32 %v639, 1.0
        %v676 = vlog2.pop %v675
        %v677 = vmul.f32 %v676, 0.6931472
        %v678 = vmul.f32 -0.5, %v639
        %v679 = vadd.f32 %v678, 1.0
        %v680 = vmul.f32 %v679, %v639
        %v681 = vand.u32 2147483647, %v639
        %vm682 = vcmp.lt.f32.partialorder %v681, 0.0004427343
        %v683 = vsel %vm682, %v680, %v677
        %v684 = vadd.f32 %v641, 1.0
        %v685 = vlog2.pop %v684
        %v686 = vmul.f32 %v685, 0.6931472
        %v687 = vmul.f32 -0.5, %v641
        %v688 = vadd.f32 %v687, 1.0
        %v689 = vmul.f32 %v688, %v641
        %v690 = vand.u32 2147483647, %v641
        %vm691 = vcmp.lt.f32.partialorder %v690, 0.0004427343
        %v692 = vsel %vm691, %v689, %v686
        %v693 = vadd.f32 %v643, 1.0
        %v694 = vlog2.pop %v693
        %v695 = vmul.f32 %v694, 0.6931472
        %v696 = vmul.f32 -0.5, %v643
        %v697 = vadd.f32 %v696, 1.0
        %v698 = vmul.f32 %v697, %v643
        %v699 = vand.u32 2147483647, %v643
        %vm700 = vcmp.lt.f32.partialorder %v699, 0.0004427343
        %v701 = vsel %vm700, %v698, %v695
        %v702 = vadd.f32 %v645, 1.0
        %v703 = vlog2.pop %v702
        %v704 = vmul.f32 %v703, 0.6931472
        %v705 = vmul.f32 -0.5, %v645
        %v706 = vadd.f32 %v705, 1.0
        %v707 = vmul.f32 %v706, %v645
        %v708 = vand.u32 2147483647, %v645
        %vm709 = vcmp.lt.f32.partialorder %v708, 0.0004427343
        %v710 = vsel %vm709, %v707, %v704
        %v711 = vadd.f32 %v647, 1.0
        %v712 = vlog2.pop %v711
        %v713 = vmul.f32 %v712, 0.6931472
        %v714 = vmul.f32 -0.5, %v647
        %v715 = vadd.f32 %v714, 1.0
        %v716 = vmul.f32 %v715, %v647
        %v717 = vand.u32 2147483647, %v647
        %vm718 = vcmp.lt.f32.partialorder %v717, 0.0004427343
        %v719 = vsel %vm718, %v716, %v713
        %v720 = vadd.f32 %v592, %v656
        %v721 = vadd.f32 %v593, %v665
        %v722 = vadd.f32 %v594, %v674
        %v723 = vadd.f32 %v595, %v683
        %v724 = vadd.f32 %v596, %v692
        %v725 = vadd.f32 %v597, %v701
        %v726 = vadd.f32 %v598, %v710
        %v727 = vadd.f32 %v599, %v719
        %v728 = vsel %vm600, %v608, %v720
        %v729 = vsel %vm601, %v609, %v721
        %v730 = vsel %vm602, %v610, %v722
        %v731 = vsel %vm603, %v611, %v723
        %v732 = vsel %vm604, %v612, %v724
        %v733 = vsel %vm605, %v613, %v725
        %v734 = vsel %vm606, %v614, %v726
        %v735 = vsel %vm607, %v615, %v727
        %v736 = vmax.f32 %v576, 0.0
        %v737 = vmax.f32 %v577, 0.0
        %v738 = vmax.f32 %v578, 0.0
        %v739 = vmax.f32 %v579, 0.0
        %v740 = vmax.f32 %v580, 0.0
        %v741 = vmax.f32 %v581, 0.0
        %v742 = vmax.f32 %v582, 0.0
        %v743 = vmax.f32 %v583, 0.0
        %vm744 = vcmp.ne.f32.partialorder %v576, %v576
        %vm745 = vcmp.ne.f32.partialorder %v577, %v577
        %vm746 = vcmp.ne.f32.partialorder %v578, %v578
        %vm747 = vcmp.ne.f32.partialorder %v579, %v579
        %vm748 = vcmp.ne.f32.partialorder %v580, %v580
        %vm749 = vcmp.ne.f32.partialorder %v581, %v581
        %vm750 = vcmp.ne.f32.partialorder %v582, %v582
        %vm751 = vcmp.ne.f32.partialorder %v583, %v583
        %v752 = vadd.f32 %v576, 0.0
        %v753 = vadd.f32 %v577, 0.0
        %v754 = vadd.f32 %v578, 0.0
        %v755 = vadd.f32 %v579, 0.0
        %v756 = vadd.f32 %v580, 0.0
        %v757 = vadd.f32 %v581, 0.0
        %v758 = vadd.f32 %v582, 0.0
        %v759 = vadd.f32 %v583, 0.0
        %v760 = vand.u32 2147483647, %v576
        %v761 = vand.u32 2147483647, %v577
        %v762 = vand.u32 2147483647, %v578
        %v763 = vand.u32 2147483647, %v579
        %v764 = vand.u32 2147483647, %v580
        %v765 = vand.u32 2147483647, %v581
        %v766 = vand.u32 2147483647, %v582
        %v767 = vand.u32 2147483647, %v583
        %v768 = vsub.f32 0.0, %v760
        %v769 = vsub.f32 0.0, %v761
        %v770 = vsub.f32 0.0, %v762
        %v771 = vsub.f32 0.0, %v763
        %v772 = vsub.f32 0.0, %v764
        %v773 = vsub.f32 0.0, %v765
        %v774 = vsub.f32 0.0, %v766
        %v775 = vsub.f32 0.0, %v767
        %v776 = vmul.f32 %v768, 1.442695
        %v777 = vpow.pop %v776
        %v778 = vmul.f32 %v769, 1.442695
        %v779 = vpow.pop %v778
        %v780 = vmul.f32 %v770, 1.442695
        %v781 = vpow.pop %v780
        %v782 = vmul.f32 %v771, 1.442695
        %v783 = vpow.pop %v782
        %v784 = vmul.f32 %v772, 1.442695
        %v785 = vpow.pop %v784
        %v786 = vmul.f32 %v773, 1.442695
        %v787 = vpow.pop %v786
        %v788 = vmul.f32 %v774, 1.442695
        %v789 = vpow.pop %v788
        %v790 = vmul.f32 %v775, 1.442695
        %v791 = vpow.pop %v790
        %v792 = vadd.f32 %v777, 1.0
        %v793 = vlog2.pop %v792
        %v794 = vmul.f32 %v793, 0.6931472
        %v795 = vmul.f32 -0.5, %v777
        %v796 = vadd.f32 %v795, 1.0
        %v797 = vmul.f32 %v796, %v777
        %v798 = vand.u32 2147483647, %v777
        %vm799 = vcmp.lt.f32.partialorder %v798, 0.0004427343
        %v800 = vsel %vm799, %v797, %v794
        %v801 = vadd.f32 %v779, 1.0
        %v802 = vlog2.pop %v801
        %v803 = vmul.f32 %v802, 0.6931472
        %v804 = vmul.f32 -0.5, %v779
        %v805 = vadd.f32 %v804, 1.0
        %v806 = vmul.f32 %v805, %v779
        %v807 = vand.u32 2147483647, %v779
        %vm808 = vcmp.lt.f32.partialorder %v807, 0.0004427343
        %v809 = vsel %vm808, %v806, %v803
        %v810 = vadd.f32 %v781, 1.0
        %v811 = vlog2.pop %v810
        %v812 = vmul.f32 %v811, 0.6931472
        %v813 = vmul.f32 -0.5, %v781
        %v814 = vadd.f32 %v813, 1.0
        %v815 = vmul.f32 %v814, %v781
        %v816 = vand.u32 2147483647, %v781
        %vm817 = vcmp.lt.f32.partialorder %v816, 0.0004427343
        %v818 = vsel %vm817, %v815, %v812
        %v819 = vadd.f32 %v783, 1.0
        %v820 = vlog2.pop %v819
        %v821 = vmul.f32 %v820, 0.6931472
        %v822 = vmul.f32 -0.5, %v783
        %v823 = vadd.f32 %v822, 1.0
        %v824 = vmul.f32 %v823, %v783
        %v825 = vand.u32 2147483647, %v783
        %vm826 = vcmp.lt.f32.partialorder %v825, 0.0004427343
        %v827 = vsel %vm826, %v824, %v821
        %v828 = vadd.f32 %v785, 1.0
        %v829 = vlog2.pop %v828
        %v830 = vmul.f32 %v829, 0.6931472
        %v831 = vmul.f32 -0.5, %v785
        %v832 = vadd.f32 %v831, 1.0
        %v833 = vmul.f32 %v832, %v785
        %v834 = vand.u32 2147483647, %v785
        %vm835 = vcmp.lt.f32.partialorder %v834, 0.0004427343
        %v836 = vsel %vm835, %v833, %v830
        %v837 = vadd.f32 %v787, 1.0
        %v838 = vlog2.pop %v837
        %v839 = vmul.f32 %v838, 0.6931472
        %v840 = vmul.f32 -0.5, %v787
        %v841 = vadd.f32 %v840, 1.0
        %v842 = vmul.f32 %v841, %v787
        %v843 = vand.u32 2147483647, %v787
        %vm844 = vcmp.lt.f32.partialorder %v843, 0.0004427343
        %v845 = vsel %vm844, %v842, %v839
        %v846 = vadd.f32 %v789, 1.0
        %v847 = vlog2.pop %v846
        %v848 = vmul.f32 %v847, 0.6931472
        %v849 = vmul.f32 -0.5, %v789
        %v850 = vadd.f32 %v849, 1.0
        %v851 = vmul.f32 %v850, %v789
        %v852 = vand.u32 2147483647, %v789
        %vm853 = vcmp.lt.f32.partialorder %v852, 0.0004427343
        %v854 = vsel %vm853, %v851, %v848
        %v855 = vadd.f32 %v791, 1.0
        %v856 = vlog2.pop %v855
        %v857 = vmul.f32 %v856, 0.6931472
        %v858 = vmul.f32 -0.5, %v791
        %v859 = vadd.f32 %v858, 1.0
        %v860 = vmul.f32 %v859, %v791
        %v861 = vand.u32 2147483647, %v791
        %vm862 = vcmp.lt.f32.partialorder %v861, 0.0004427343
        %v863 = vsel %vm862, %v860, %v857
        %v864 = vadd.f32 %v736, %v800
        %v865 = vadd.f32 %v737, %v809
        %v866 = vadd.f32 %v738, %v818
        %v867 = vadd.f32 %v739, %v827
        %v868 = vadd.f32 %v740, %v836
        %v869 = vadd.f32 %v741, %v845
        %v870 = vadd.f32 %v742, %v854
        %v871 = vadd.f32 %v743, %v863
        %v872 = vsel %vm744, %v752, %v864
        %v873 = vsel %vm745, %v753, %v865
        %v874 = vsel %vm746, %v754, %v866
        %v875 = vsel %vm747, %v755, %v867
        %v876 = vsel %vm748, %v756, %v868
        %v877 = vsel %vm749, %v757, %v869
        %v878 = vsel %vm750, %v758, %v870
        %v879 = vsel %vm751, %v759, %v871
        %v880 = vsub.f32 %v560, %v728
        %v881 = vsub.f32 %v561, %v729
        %v882 = vsub.f32 %v562, %v730
        %v883 = vsub.f32 %v563, %v731
        %v884 = vsub.f32 %v564, %v732
        %v885 = vsub.f32 %v565, %v733
        %v886 = vsub.f32 %v566, %v734
        %v887 = vsub.f32 %v567, %v735
        %v888 = vsub.f32 0.0, %v872
        %v889 = vsub.f32 0.0, %v873
        %v890 = vsub.f32 0.0, %v874
        %v891 = vsub.f32 0.0, %v875
        %v892 = vsub.f32 0.0, %v876
        %v893 = vsub.f32 0.0, %v877
        %v894 = vsub.f32 0.0, %v878
        %v895 = vsub.f32 0.0, %v879
        %v896 = vsub.f32 %v576, %v872
        %v897 = vsub.f32 %v577, %v873
        %v898 = vsub.f32 %v578, %v874
        %v899 = vsub.f32 %v579, %v875
        %v900 = vsub.f32 %v580, %v876
        %v901 = vsub.f32 %v581, %v877
        %v902 = vsub.f32 %v582, %v878
        %v903 = vsub.f32 %v583, %v879
        %v904 = vsub.f32 %v896, %v880
        %v905 = vsub.f32 %v897, %v881
        %v906 = vsub.f32 %v898, %v882
        %v907 = vsub.f32 %v899, %v883
        %v908 = vsub.f32 %v900, %v884
        %v909 = vsub.f32 %v901, %v885
        %v910 = vsub.f32 %v902, %v886
        %v911 = vsub.f32 %v903, %v887
        %v912 = vmin.f32 %v904, 0.0
        %v913 = vmin.f32 %v905, 0.0
        %v914 = vmin.f32 %v906, 0.0
        %v915 = vmin.f32 %v907, 0.0
        %v916 = vmin.f32 %v908, 0.0
        %v917 = vmin.f32 %v909, 0.0
        %v918 = vmin.f32 %v910, 0.0
        %v919 = vmin.f32 %v911, 0.0
        %v920 = vmul.f32 %v912, 1.442695
        %v921 = vpow.pop %v920
        %v922 = vmul.f32 %v913, 1.442695
        %v923 = vpow.pop %v922
        %v924 = vmul.f32 %v914, 1.442695
        %v925 = vpow.pop %v924
        %v926 = vmul.f32 %v915, 1.442695
        %v927 = vpow.pop %v926
        %v928 = vmul.f32 %v916, 1.442695
        %v929 = vpow.pop %v928
        %v930 = vmul.f32 %v917, 1.442695
        %v931 = vpow.pop %v930
        %v932 = vmul.f32 %v918, 1.442695
        %v933 = vpow.pop %v932
        %v934 = vmul.f32 %v919, 1.442695
        %v935 = vpow.pop %v934
        %v936 = vsub.f32 1.0, %v921
        %v937 = vsub.f32 1.0, %v923
        %v938 = vsub.f32 1.0, %v925
        %v939 = vsub.f32 1.0, %v927
        %v940 = vsub.f32 1.0, %v929
        %v941 = vsub.f32 1.0, %v931
        %v942 = vsub.f32 1.0, %v933
        %v943 = vsub.f32 1.0, %v935
        %v944 = vmax.f32 %v936, 1e-12
        %v945 = vmax.f32 %v937, 1e-12
        %v946 = vmax.f32 %v938, 1e-12
        %v947 = vmax.f32 %v939, 1e-12
        %v948 = vmax.f32 %v940, 1e-12
        %v949 = vmax.f32 %v941, 1e-12
        %v950 = vmax.f32 %v942, 1e-12
        %v951 = vmax.f32 %v943, 1e-12
        %v952 = vlog2.pop %v944
        %v953 = vmul.f32 %v952, 0.6931472
        %v954 = vlog2.pop %v945
        %v955 = vmul.f32 %v954, 0.6931472
        %v956 = vlog2.pop %v946
        %v957 = vmul.f32 %v956, 0.6931472
        %v958 = vlog2.pop %v947
        %v959 = vmul.f32 %v958, 0.6931472
        %v960 = vlog2.pop %v948
        %v961 = vmul.f32 %v960, 0.6931472
        %v962 = vlog2.pop %v949
        %v963 = vmul.f32 %v962, 0.6931472
        %v964 = vlog2.pop %v950
        %v965 = vmul.f32 %v964, 0.6931472
        %v966 = vlog2.pop %v951
        %v967 = vmul.f32 %v966, 0.6931472
        %v968 = vadd.f32 %v880, %v953
        %v969 = vadd.f32 %v881, %v955
        %v970 = vadd.f32 %v882, %v957
        %v971 = vadd.f32 %v883, %v959
        %v972 = vadd.f32 %v884, %v961
        %v973 = vadd.f32 %v885, %v963
        %v974 = vadd.f32 %v886, %v965
        %v975 = vadd.f32 %v887, %v967
        %v976 = vsub.f32 %v584, %v262
        %v977 = vsub.f32 %v585, %v263
        %v978 = vsub.f32 %v586, %v264
        %v979 = vsub.f32 %v587, %v265
        %v980 = vsub.f32 %v588, %v266
        %v981 = vsub.f32 %v589, %v267
        %v982 = vsub.f32 %v590, %v268
        %v983 = vsub.f32 %v591, %v269
        %v984 = vmax.f32 %v584, 0.0
        %v985 = vmax.f32 %v585, 0.0
        %v986 = vmax.f32 %v586, 0.0
        %v987 = vmax.f32 %v587, 0.0
        %v988 = vmax.f32 %v588, 0.0
        %v989 = vmax.f32 %v589, 0.0
        %v990 = vmax.f32 %v590, 0.0
        %v991 = vmax.f32 %v591, 0.0
        %vm992 = vcmp.ne.f32.partialorder %v584, %v584
        %vm993 = vcmp.ne.f32.partialorder %v585, %v585
        %vm994 = vcmp.ne.f32.partialorder %v586, %v586
        %vm995 = vcmp.ne.f32.partialorder %v587, %v587
        %vm996 = vcmp.ne.f32.partialorder %v588, %v588
        %vm997 = vcmp.ne.f32.partialorder %v589, %v589
        %vm998 = vcmp.ne.f32.partialorder %v590, %v590
        %vm999 = vcmp.ne.f32.partialorder %v591, %v591
        %v1000 = vadd.f32 %v584, 0.0
        %v1001 = vadd.f32 %v585, 0.0
        %v1002 = vadd.f32 %v586, 0.0
        %v1003 = vadd.f32 %v587, 0.0
        %v1004 = vadd.f32 %v588, 0.0
        %v1005 = vadd.f32 %v589, 0.0
        %v1006 = vadd.f32 %v590, 0.0
        %v1007 = vadd.f32 %v591, 0.0
        %v1008 = vand.u32 2147483647, %v584
        %v1009 = vand.u32 2147483647, %v585
        %v1010 = vand.u32 2147483647, %v586
        %v1011 = vand.u32 2147483647, %v587
        %v1012 = vand.u32 2147483647, %v588
        %v1013 = vand.u32 2147483647, %v589
        %v1014 = vand.u32 2147483647, %v590
        %v1015 = vand.u32 2147483647, %v591
        %v1016 = vsub.f32 0.0, %v1008
        %v1017 = vsub.f32 0.0, %v1009
        %v1018 = vsub.f32 0.0, %v1010
        %v1019 = vsub.f32 0.0, %v1011
        %v1020 = vsub.f32 0.0, %v1012
        %v1021 = vsub.f32 0.0, %v1013
        %v1022 = vsub.f32 0.0, %v1014
        %v1023 = vsub.f32 0.0, %v1015
        %v1024 = vmul.f32 %v1016, 1.442695
        %v1025 = vpow.pop %v1024
        %v1026 = vmul.f32 %v1017, 1.442695
        %v1027 = vpow.pop %v1026
        %v1028 = vmul.f32 %v1018, 1.442695
        %v1029 = vpow.pop %v1028
        %v1030 = vmul.f32 %v1019, 1.442695
        %v1031 = vpow.pop %v1030
        %v1032 = vmul.f32 %v1020, 1.442695
        %v1033 = vpow.pop %v1032
        %v1034 = vmul.f32 %v1021, 1.442695
        %v1035 = vpow.pop %v1034
        %v1036 = vmul.f32 %v1022, 1.442695
        %v1037 = vpow.pop %v1036
        %v1038 = vmul.f32 %v1023, 1.442695
        %v1039 = vpow.pop %v1038
        %v1040 = vadd.f32 %v1025, 1.0
        %v1041 = vlog2.pop %v1040
        %v1042 = vmul.f32 %v1041, 0.6931472
        %v1043 = vmul.f32 -0.5, %v1025
        %v1044 = vadd.f32 %v1043, 1.0
        %v1045 = vmul.f32 %v1044, %v1025
        %v1046 = vand.u32 2147483647, %v1025
        %vm1047 = vcmp.lt.f32.partialorder %v1046, 0.0004427343
        %v1048 = vsel %vm1047, %v1045, %v1042
        %v1049 = vadd.f32 %v1027, 1.0
        %v1050 = vlog2.pop %v1049
        %v1051 = vmul.f32 %v1050, 0.6931472
        %v1052 = vmul.f32 -0.5, %v1027
        %v1053 = vadd.f32 %v1052, 1.0
        %v1054 = vmul.f32 %v1053, %v1027
        %v1055 = vand.u32 2147483647, %v1027
        %vm1056 = vcmp.lt.f32.partialorder %v1055, 0.0004427343
        %v1057 = vsel %vm1056, %v1054, %v1051
        %v1058 = vadd.f32 %v1029, 1.0
        %v1059 = vlog2.pop %v1058
        %v1060 = vmul.f32 %v1059, 0.6931472
        %v1061 = vmul.f32 -0.5, %v1029
        %v1062 = vadd.f32 %v1061, 1.0
        %v1063 = vmul.f32 %v1062, %v1029
        %v1064 = vand.u32 2147483647, %v1029
        %vm1065 = vcmp.lt.f32.partialorder %v1064, 0.0004427343
        %v1066 = vsel %vm1065, %v1063, %v1060
        %v1067 = vadd.f32 %v1031, 1.0
        %v1068 = vlog2.pop %v1067
        %v1069 = vmul.f32 %v1068, 0.6931472
        %v1070 = vmul.f32 -0.5, %v1031
        %v1071 = vadd.f32 %v1070, 1.0
        %v1072 = vmul.f32 %v1071, %v1031
        %v1073 = vand.u32 2147483647, %v1031
        %vm1074 = vcmp.lt.f32.partialorder %v1073, 0.0004427343
        %v1075 = vsel %vm1074, %v1072, %v1069
        %v1076 = vadd.f32 %v1033, 1.0
        %v1077 = vlog2.pop %v1076
        %v1078 = vmul.f32 %v1077, 0.6931472
        %v1079 = vmul.f32 -0.5, %v1033
        %v1080 = vadd.f32 %v1079, 1.0
        %v1081 = vmul.f32 %v1080, %v1033
        %v1082 = vand.u32 2147483647, %v1033
        %vm1083 = vcmp.lt.f32.partialorder %v1082, 0.0004427343
        %v1084 = vsel %vm1083, %v1081, %v1078
        %v1085 = vadd.f32 %v1035, 1.0
        %v1086 = vlog2.pop %v1085
        %v1087 = vmul.f32 %v1086, 0.6931472
        %v1088 = vmul.f32 -0.5, %v1035
        %v1089 = vadd.f32 %v1088, 1.0
        %v1090 = vmul.f32 %v1089, %v1035
        %v1091 = vand.u32 2147483647, %v1035
        %vm1092 = vcmp.lt.f32.partialorder %v1091, 0.0004427343
        %v1093 = vsel %vm1092, %v1090, %v1087
        %v1094 = vadd.f32 %v1037, 1.0
        %v1095 = vlog2.pop %v1094
        %v1096 = vmul.f32 %v1095, 0.6931472
        %v1097 = vmul.f32 -0.5, %v1037
        %v1098 = vadd.f32 %v1097, 1.0
        %v1099 = vmul.f32 %v1098, %v1037
        %v1100 = vand.u32 2147483647, %v1037
        %vm1101 = vcmp.lt.f32.partialorder %v1100, 0.0004427343
        %v1102 = vsel %vm1101, %v1099, %v1096
        %v1103 = vadd.f32 %v1039, 1.0
        %v1104 = vlog2.pop %v1103
        %v1105 = vmul.f32 %v1104, 0.6931472
        %v1106 = vmul.f32 -0.5, %v1039
        %v1107 = vadd.f32 %v1106, 1.0
        %v1108 = vmul.f32 %v1107, %v1039
        %v1109 = vand.u32 2147483647, %v1039
        %vm1110 = vcmp.lt.f32.partialorder %v1109, 0.0004427343
        %v1111 = vsel %vm1110, %v1108, %v1105
        %v1112 = vadd.f32 %v984, %v1048
        %v1113 = vadd.f32 %v985, %v1057
        %v1114 = vadd.f32 %v986, %v1066
        %v1115 = vadd.f32 %v987, %v1075
        %v1116 = vadd.f32 %v988, %v1084
        %v1117 = vadd.f32 %v989, %v1093
        %v1118 = vadd.f32 %v990, %v1102
        %v1119 = vadd.f32 %v991, %v1111
        %v1120 = vsel %vm992, %v1000, %v1112
        %v1121 = vsel %vm993, %v1001, %v1113
        %v1122 = vsel %vm994, %v1002, %v1114
        %v1123 = vsel %vm995, %v1003, %v1115
        %v1124 = vsel %vm996, %v1004, %v1116
        %v1125 = vsel %vm997, %v1005, %v1117
        %v1126 = vsel %vm998, %v1006, %v1118
        %v1127 = vsel %vm999, %v1007, %v1119
        %v1128 = vmul.f32 %v1120, 2.0
        %v1129 = vmul.f32 %v1121, 2.0
        %v1130 = vmul.f32 %v1122, 2.0
        %v1131 = vmul.f32 %v1123, 2.0
        %v1132 = vmul.f32 %v1124, 2.0
        %v1133 = vmul.f32 %v1125, 2.0
        %v1134 = vmul.f32 %v1126, 2.0
        %v1135 = vmul.f32 %v1127, 2.0
        %v1136 = vsub.f32 %v976, %v1128
        %v1137 = vsub.f32 %v977, %v1129
        %v1138 = vsub.f32 %v978, %v1130
        %v1139 = vsub.f32 %v979, %v1131
        %v1140 = vsub.f32 %v980, %v1132
        %v1141 = vsub.f32 %v981, %v1133
        %v1142 = vsub.f32 %v982, %v1134
        %v1143 = vsub.f32 %v983, %v1135
        %vm1144 = vcmp.gt.f32.partialorder %v968, -11.512925
        %vm1145 = vcmp.gt.f32.partialorder %v969, -11.512925
        %vm1146 = vcmp.gt.f32.partialorder %v970, -11.512925
        %vm1147 = vcmp.gt.f32.partialorder %v971, -11.512925
        %vm1148 = vcmp.gt.f32.partialorder %v972, -11.512925
        %vm1149 = vcmp.gt.f32.partialorder %v973, -11.512925
        %vm1150 = vcmp.gt.f32.partialorder %v974, -11.512925
        %vm1151 = vcmp.gt.f32.partialorder %v975, -11.512925
        %v1152 = vsub.f32 %v1136, 4.8481164
        %v1153 = vsub.f32 %v1137, 4.8481164
        %v1154 = vsub.f32 %v1138, 4.8481164
        %v1155 = vsub.f32 %v1139, 4.8481164
        %v1156 = vsub.f32 %v1140, 4.8481164
        %v1157 = vsub.f32 %v1141, 4.8481164
        %v1158 = vsub.f32 %v1142, 4.8481164
        %v1159 = vsub.f32 %v1143, 4.8481164
        %v1160 = vsel %vm1144, %v968, %v1152
        %v1161 = vsel %vm1145, %v969, %v1153
        %v1162 = vsel %vm1146, %v970, %v1154
        %v1163 = vsel %vm1147, %v971, %v1155
        %v1164 = vsel %vm1148, %v972, %v1156
        %v1165 = vsel %vm1149, %v973, %v1157
        %v1166 = vsel %vm1150, %v974, %v1158
        %v1167 = vsel %vm1151, %v975, %v1159
        %v1168 = vsel %vm504, %v888, %v1160
        %v1169 = vsel %vm505, %v889, %v1161
        %v1170 = vsel %vm506, %v890, %v1162
        %v1171 = vsel %vm507, %v891, %v1163
        %v1172 = vsel %vm508, %v892, %v1164
        %v1173 = vsel %vm509, %v893, %v1165
        %v1174 = vsel %vm510, %v894, %v1166
        %v1175 = vsel %vm511, %v895, %v1167
        %v1176 = vsel %vm512, %v880, %v1168
        %v1177 = vsel %vm513, %v881, %v1169
        %v1178 = vsel %vm514, %v882, %v1170
        %v1179 = vsel %vm515, %v883, %v1171
        %v1180 = vsel %vm516, %v884, %v1172
        %v1181 = vsel %vm517, %v885, %v1173
        %v1182 = vsel %vm518, %v886, %v1174
        %v1183 = vsel %vm519, %v887, %v1175
        %v1188 = vrot.slane %v1178, 2
        %v1189 = vrot.slane %v1180, 2
        %v1190 = vsel %vm300, %v1188, %v1189
        %v1191 = vrot.slane %v1179, 2
        %v1192 = vrot.slane %v1181, 2
        %v1193 = vsel %vm300, %v1191, %v1192
        %v1198 = vadd.f32 %v1176, %v1190
        %v1199 = vadd.f32 %v1177, %v1193
        %v1200 = vadd.f32 %v1178, %v1189
        %v1201 = vadd.f32 %v1179, %v1192
        %v1204 = vrot.slane %v1180, 4
        %v1205 = vrot.slane %v1182, 4
        %v1206 = vsel %vm232, %v1204, %v1205
        %v1207 = vrot.slane %v1181, 4
        %v1208 = vrot.slane %v1183, 4
        %v1209 = vsel %vm232, %v1207, %v1208
        %v1214 = vadd.f32 %v1198, %v1206
        %v1215 = vadd.f32 %v1199, %v1209
        %v1216 = vadd.f32 %v1200, %v1205
        %v1217 = vadd.f32 %v1201, %v1208
        %v1218 = vsel %vm257, %v214, -inf
        %v1219 = vmax.f32 %v212, %v1218
        %v1220 = vrot.slane %v1219, 4
        %v1221 = vmax.f32 %v1219, %v1220
        %v1222 = vrot.slane %v1221, 2
        %v1223 = vmax.f32 %v1221, %v1222
        %v1224 = vrot.slane %v1223, 1
        %v1225 = vmax.f32 %v1223, %v1224
        %v1226 = vsel %vm257, %v215, -inf
        %v1227 = vmax.f32 %v213, %v1226
        %v1228 = vrot.slane %v1227, 4
        %v1229 = vmax.f32 %v1227, %v1228
        %v1230 = vrot.slane %v1229, 2
        %v1231 = vmax.f32 %v1229, %v1230
        %v1232 = vrot.slane %v1231, 1
        %v1233 = vmax.f32 %v1231, %v1232
        %v1234 = vsub.f32 %v212, %v1225
        %v1235 = vsub.f32 %v213, %v1233
        %v1236 = vsub.f32 %v214, %v1225
        %v1237 = vsub.f32 %v215, %v1233
        %v1238 = vmul.f32 %v1234, 1.442695
        %v1239 = vpow.pop %v1238
        %v1240 = vmul.f32 %v1235, 1.442695
        %v1241 = vpow.pop %v1240
        %v1242 = vmul.f32 %v1236, 1.442695
        %v1243 = vpow.pop %v1242
        %v1244 = vmul.f32 %v1237, 1.442695
        %v1245 = vpow.pop %v1244
        %v1246 = vsel %vm257, %v1243, 0.0
        %v1247 = vadd.f32 %v1239, %v1246
        %v1248 = vrot.slane %v1247, 4
        %v1249 = vadd.f32 %v1247, %v1248
        %v1250 = vrot.slane %v1249, 2
        %v1251 = vadd.f32 %v1249, %v1250
        %v1252 = vrot.slane %v1251, 1
        %v1253 = vadd.f32 %v1251, %v1252
        %v1254 = vsel %vm257, %v1245, 0.0
        %v1255 = vadd.f32 %v1241, %v1254
        %v1256 = vrot.slane %v1255, 4
        %v1257 = vadd.f32 %v1255, %v1256
        %v1258 = vrot.slane %v1257, 2
        %v1259 = vadd.f32 %v1257, %v1258
        %v1260 = vrot.slane %v1259, 1
        %v1261 = vadd.f32 %v1259, %v1260
        %v1262 = vlog2.pop %v1253
        %v1263 = vmul.f32 %v1262, 0.6931472
        %v1264 = vlog2.pop %v1261
        %v1265 = vmul.f32 %v1264, 0.6931472
        %v1266 = vadd.f32 %v1225, %v1263
        %v1267 = vadd.f32 %v1233, %v1265
        %v1268 = vsub.f32 %v212, %v1266
        %v1269 = vsub.f32 %v213, %v1267
        %v1270 = vsub.f32 %v214, %v1266
        %v1271 = vsub.f32 %v215, %v1267
        %v1272 = vadd.f32 %v1214, %v1268
        %v1273 = vadd.f32 %v1215, %v1269
        %v1274 = vadd.f32 %v1216, %v1270
        %v1275 = vadd.f32 %v1217, %v1271
        %v1276 = vsel %vm257, %v1274, -inf
        %v1277 = vmax.f32 %v1272, %v1276
        %v1278 = vrot.slane %v1277, 4
        %v1279 = vmax.f32 %v1277, %v1278
        %v1280 = vrot.slane %v1279, 2
        %v1281 = vmax.f32 %v1279, %v1280
        %v1282 = vrot.slane %v1281, 1
        %v1283 = vmax.f32 %v1281, %v1282
        %v1284 = vsel %vm257, %v1275, -inf
        %v1285 = vmax.f32 %v1273, %v1284
        %v1286 = vrot.slane %v1285, 4
        %v1287 = vmax.f32 %v1285, %v1286
        %v1288 = vrot.slane %v1287, 2
        %v1289 = vmax.f32 %v1287, %v1288
        %v1290 = vrot.slane %v1289, 1
        %v1291 = vmax.f32 %v1289, %v1290
        %v1292 = vsub.f32 %v1272, %v1283
        %v1293 = vsub.f32 %v1273, %v1291
        %v1294 = vsub.f32 %v1274, %v1283
        %v1295 = vsub.f32 %v1275, %v1291
        %v1296 = vmul.f32 %v1292, 1.442695
        %v1297 = vpow.pop %v1296
        %v1298 = vmul.f32 %v1293, 1.442695
        %v1299 = vpow.pop %v1298
        %v1300 = vmul.f32 %v1294, 1.442695
        %v1301 = vpow.pop %v1300
        %v1302 = vmul.f32 %v1295, 1.442695
        %v1303 = vpow.pop %v1302
        %v1304 = vsel %vm257, %v1301, 0.0
        %v1305 = vadd.f32 %v1297, %v1304
        %v1306 = vrot.slane %v1305, 4
        %v1307 = vadd.f32 %v1305, %v1306
        %v1308 = vrot.slane %v1307, 2
        %v1309 = vadd.f32 %v1307, %v1308
        %v1310 = vrot.slane %v1309, 1
        %v1311 = vadd.f32 %v1309, %v1310
        %v1312 = vsel %vm257, %v1303, 0.0
        %v1313 = vadd.f32 %v1299, %v1312
        %v1314 = vrot.slane %v1313, 4
        %v1315 = vadd.f32 %v1313, %v1314
        %v1316 = vrot.slane %v1315, 2
        %v1317 = vadd.f32 %v1315, %v1316
        %v1318 = vrot.slane %v1317, 1
        %v1319 = vadd.f32 %v1317, %v1318
        %v1320 = vlog2.pop %v1311
        %v1321 = vmul.f32 %v1320, 0.6931472
        %v1322 = vlog2.pop %v1319
        %v1323 = vmul.f32 %v1322, 0.6931472
        %v1324 = vadd.f32 %v1283, %v1321
        %v1325 = vadd.f32 %v1291, %v1323
        %v1328 = vcombine.low %v1324, %v1325
        %v1330 = vunpack.c.l.s4 1966171168
        %v1331 = vunpack.c.0.s8 %v1330
        %v1332 = vlaneseq
        %v1333 = vshrl.u32 %v1332, 7
        %v1334 = vsub.s32 %v1331, %v1333
        %v1335 = vrot.slane %v1328, %v1334
        %v1337 = vunpack.c.l.s4 1966171168
        %v1338 = vunpack.c.0.s8 %v1337
        %v1339 = vlaneseq
        %v1340 = vshrl.u32 %v1339, 7
        %v1341 = vsub.s32 %v1338, %v1340
        %v1342 = vrot.slane %v1335, %v1341
        %v1344 = vlaneseq
        %vm1345 = vcmp.ge.s32.totalorder %v1344, 0
        %vm1346 = vcmp.lt.s32.totalorder %v1344, 256
        %vm1347 = vmand %vm1345, %vm1346
        %1348 = vst.msk [vmem:[%s187] sm:$0x3] %vm1347, %v1342
        %s1349 = sand.u32 %s94, 1
        %s1350 = scalar_lea.sflag [#allocation3], %s1349
        %s1351 = sand.u32 %s94, 1
        %s1352 = smul.addr %s1351, 2
        %s1353 = scalar_lea.vmem [#allocation2], %s1352
        // Predicated region
        $region29: #{tpu_custom_call.1} parent=27 // pred_check
          %p1354 = pneg %p104
        $region30: #{tpu_custom_call.1} parent=27 // pred_check_branch
          %1356 = sbr.rel (%p1354) target = $region32
        $region31: #{tpu_custom_call.1} parent=27 // pred_region
          %s1357 = smul.u32 2, %s21
          %s1359 = ssub.s32 32, 32
          %1360 = vsyncadd %s1350, %s1359
          %s1361 = smul.addr %s20, 2
          %s1362 = sadd.s32 %s1357, %s1361
          %s1363 = smul.addr %s1362, 16
          %s1364 = scalar_lea.hbm %s2, %s1363
          %s1366 = sshll.u32 %s1353, 4
          %s1367 = int_to_ptr.vmem [resolvable:$true] %s1366
          %1369 = dma.vmem_to_hbm [thread:$0]  %s1367, 32, %s1364, %s1350
        $region32: #{tpu_custom_call.1} parent=27 // pred_fallthru
          _
      $region28: #{tpu_custom_call.1} parent=5 // pred_fallthru
        _
      %p1370 = scmp.le.s32.totalorder 2, %s11
      // Predicated region
      $region33: #{tpu_custom_call.1} parent=5 // pred_check
        %p1371 = pneg %p1370
      $region34: #{tpu_custom_call.1} parent=5 // pred_check_branch
        %1373 = sbr.rel (%p1371) target = $region36
      $region35: #{tpu_custom_call.1} parent=5 // pred_region
        %s1374 = ssub.s32 %s11, 2
        // Predicated region
        $region37: #{tpu_custom_call.1} parent=35 // pred_check
          %p1375 = pneg %p110
        $region38: #{tpu_custom_call.1} parent=35 // pred_check_branch
          %1377 = sbr.rel (%p1375) target = $region40
        $region39: #{tpu_custom_call.1} parent=35 // pred_region
          %s1378 = sand.u32 %s95, 1
          %s1379 = scalar_lea.sflag [#allocation3], %s1378
          %s1380 = sand.u32 %s95, 1
          %s1381 = smul.addr %s1380, 2
          %s1382 = scalar_lea.vmem [#allocation2], %s1381
          %1383 = dma.done %s1379, 32
        $region40: #{tpu_custom_call.1} parent=35 // pred_fallthru
          _
      $region36: #{tpu_custom_call.1} parent=5 // pred_fallthru
        _
    $region6: #{tpu_custom_call.1} parent=1 // loop_footer
      %s15 = sadd.s32 1, %s11
    $region7: #{tpu_custom_call.1} parent=1 // loop_footer_branch
      %10 = sbr.rel target = $region3
    $region8: #{tpu_custom_call.1} parent=1 // loop_exit
      _
    %1384 = vsyncpa [#allocation3], 1
    %s1385 = scalar_lea.sflag [#allocation3], 1
    %1386 = vsyncpa %s1385, 1

</llo_original>
